<compile_context>
chip_gen: v6e
topology: v6e:2x2x1
jax: 0.10.0
libtpu: 0.0.40
codegen_flags: <defaults>
</compile_context>

<pallas_src>
import math
from functools import partial

import jax
import jax.numpy as jnp
import numpy as np
from jax.experimental import pallas as pl
from jax.experimental.pallas import tpu as pltpu

# ----------------------------- model dims (small, synthetic) ------------------
SEQ = 8          # L
BATCH = 2        # N
D_MODEL = 32     # E
N_HEAD = 4
MLP_RATIO = 4.0
MLP_WIDTH = int(D_MODEL * MLP_RATIO)
LN_EPS = 1e-5


# ----------------------------- in-kernel helpers -------------------------------
def _layernorm(v, gamma, beta):
    # torch F.layer_norm over the last dim, biased variance, eps=1e-5
    mu = jnp.mean(v, axis=-1, keepdims=True)
    c = v - mu
    var = jnp.mean(c * c, axis=-1, keepdims=True)
    return c * jax.lax.rsqrt(var + LN_EPS) * gamma + beta


def _erf_approx(z):
    # Abramowitz & Stegun 7.1.26 rational approximation, |err| < 1.5e-7.
    # (exact-erf GELU of nn.GELU(); the erf primitive is not guaranteed to lower in Mosaic)
    a1, a2, a3, a4, a5 = 0.254829592, -0.284496736, 1.421413741, -1.453152027, 1.061405429
    p = 0.3275911
    sgn = jnp.where(z >= 0.0, 1.0, -1.0)
    az = jnp.abs(z)
    t = 1.0 / (1.0 + p * az)
    poly = ((((a5 * t + a4) * t + a3) * t + a2) * t + a1) * t
    return sgn * (1.0 - poly * jnp.exp(-az * az))


def _gelu_exact(x):
    return 0.5 * x * (1.0 + _erf_approx(x * (1.0 / math.sqrt(2.0))))


# ----------------------------- the Pallas kernel --------------------------------
def _rab_kernel(x_ref,
                ln1_g_ref, ln1_b_ref,
                wqkv_ref, bqkv_ref,      # wqkv_ref: (E, 3E)  pre-transposed
                wo_ref, bo_ref,          # wo_ref:   (E, E)   pre-transposed
                ln2_g_ref, ln2_b_ref,
                wfc_ref, bfc_ref,        # wfc_ref:  (E, MLP) pre-transposed
                wproj_ref, bproj_ref,    # wproj_ref:(MLP, E) pre-transposed
                o_ref,
                *, n_head, n_batch, seq_len):
    x = x_ref[...]                                   # (N*L, E), batch-major rows
    NL, E = x.shape
    hd = E // n_head
    scale = 1.0 / math.sqrt(hd)

    # ---- ln_1 + fused QKV projection (single matmul, pre-transposed weight) ----
    xn = _layernorm(x, ln1_g_ref[...], ln1_b_ref[...])
    qkv = jnp.dot(xn, wqkv_ref[...], preferred_element_type=jnp.float32) + bqkv_ref[...]

    # ---- scaled dot-product attention, batched over N, looped over heads -------
    # Leading-dim reshapes (N*L, hd) <-> (N, L, hd) are tile-aligned (L == 8) and
    # layout-preserving; no in-kernel weight transposes anywhere.
    head_outs = []
    for h in range(n_head):
        qh = (qkv[:, 0 * E + h * hd: 0 * E + (h + 1) * hd] * scale).reshape(n_batch, seq_len, hd)
        kh = qkv[:, 1 * E + h * hd: 1 * E + (h + 1) * hd].reshape(n_batch, seq_len, hd)
        vh = qkv[:, 2 * E + h * hd: 2 * E + (h + 1) * hd].reshape(n_batch, seq_len, hd)
        s = jnp.einsum('nld,nmd->nlm', qh, kh,
                       preferred_element_type=jnp.float32)          # (N, L, L)
        s = s - jnp.max(s, axis=-1, keepdims=True)
        p = jnp.exp(s)
        p = p * pl.reciprocal(jnp.sum(p, axis=-1, keepdims=True), approx=True)
        oh = jnp.einsum('nlm,nmd->nld', p, vh,
                        preferred_element_type=jnp.float32)          # (N, L, hd)
        head_outs.append(oh.reshape(NL, hd))

    # single fused out-projection for all heads: (N*L, E) @ (E, E)
    o_heads = jnp.concatenate(head_outs, axis=-1)                    # (N*L, E)
    attn = jnp.dot(o_heads, wo_ref[...], preferred_element_type=jnp.float32) + bo_ref[...]

    # ---- residual 1 (ls_1 is Identity) ------------------------------------------
    x1 = x + attn

    # ---- ln_2 + MLP (c_fc -> GELU -> c_proj) + residual 2 -----------------------
    y = _layernorm(x1, ln2_g_ref[...], ln2_b_ref[...])
    hid = jnp.dot(y, wfc_ref[...], preferred_element_type=jnp.float32) + bfc_ref[...]
    hid = _gelu_exact(hid)                                           # (N*L, MLP) lane-dense
    m = jnp.dot(hid, wproj_ref[...], preferred_element_type=jnp.float32) + bproj_ref[...]

    o_ref[...] = (x1 + m).astype(o_ref.dtype)


# ----------------------------- wrapper -------------------------------------------
def residual_attention_block(x_lnd, params):
    """x_lnd: (L, N, E) float32, seq-first like torch. Returns (L, N, E)."""
    L, N, E = x_lnd.shape
    x2d = jnp.transpose(x_lnd, (1, 0, 2)).reshape(N * L, E)   # batch-major rows

    vmem = pl.BlockSpec(memory_space=pltpu.MemorySpace.VMEM)  # whole array, single copy

    out2d = pl.pallas_call(
        partial(_rab_kernel, n_head=N_HEAD, n_batch=N, seq_len=L),
        out_shape=jax.ShapeDtypeStruct((N * L, E), x_lnd.dtype),
        in_specs=[vmem] * 13,
        out_specs=vmem,
    )(
        x2d,
        params["ln1_g"], params["ln1_b"],
        jnp.transpose(params["wqkv"]), params["bqkv"],     # pre-transpose in XLA (free)
        jnp.transpose(params["wo"]), params["bo"],
        params["ln2_g"], params["ln2_b"],
        jnp.transpose(params["wfc"]), params["bfc"],
        jnp.transpose(params["wproj"]), params["bproj"],
    )
    return jnp.transpose(out2d.reshape(N, L, E), (1, 0, 2))


# ----------------------------- pure-JAX reference (for sanity) --------------------
def _ref_block(x_lnd, p):
    def ln(v, g, b):
        mu = jnp.mean(v, axis=-1, keepdims=True)
        var = jnp.mean((v - mu) ** 2, axis=-1, keepdims=True)
        return (v - mu) / jnp.sqrt(var + LN_EPS) * g[0] + b[0]

    L, N, E = x_lnd.shape
    hd = E // N_HEAD
    xn = ln(x_lnd, p["ln1_g"], p["ln1_b"])
    qkv = jnp.einsum("lne,fe->lnf", xn, p["wqkv"]) + p["bqkv"][0]
    q, k, v = jnp.split(qkv, 3, axis=-1)
    q = q.reshape(L, N, N_HEAD, hd) / math.sqrt(hd)
    k = k.reshape(L, N, N_HEAD, hd)
    v = v.reshape(L, N, N_HEAD, hd)
    s = jnp.einsum("lnhd,mnhd->nhlm", q, k)
    pr = jax.nn.softmax(s, axis=-1)
    o = jnp.einsum("nhlm,mnhd->lnhd", pr, v).reshape(L, N, E)
    attn = jnp.einsum("lne,fe->lnf", o, p["wo"]) + p["bo"][0]
    x1 = x_lnd + attn
    y = ln(x1, p["ln2_g"], p["ln2_b"])
    h = jax.nn.gelu(jnp.einsum("lne,fe->lnf", y, p["wfc"]) + p["bfc"][0], approximate=False)
    m = jnp.einsum("lnf,ef->lne", h, p["wproj"]) + p["bproj"][0]
    return x1 + m


# ----------------------------- main ------------------------------------------------
if __name__ == "__main__":
    key = jax.random.PRNGKey(0)
    ks = jax.random.split(key, 8)

    # deterministic synthetic parameters (torch-like: LN gamma=1/beta=0, zero biases)
    params = {
        "ln1_g": jnp.ones((1, D_MODEL), jnp.float32),
        "ln1_b": jnp.zeros((1, D_MODEL), jnp.float32),
        "wqkv": 0.05 * jax.random.normal(ks[0], (3 * D_MODEL, D_MODEL), jnp.float32),
        "bqkv": jnp.zeros((1, 3 * D_MODEL), jnp.float32),
        "wo": 0.05 * jax.random.normal(ks[1], (D_MODEL, D_MODEL), jnp.float32),
        "bo": jnp.zeros((1, D_MODEL), jnp.float32),
        "ln2_g": jnp.ones((1, D_MODEL), jnp.float32),
        "ln2_b": jnp.zeros((1, D_MODEL), jnp.float32),
        "wfc": 0.05 * jax.random.normal(ks[2], (MLP_WIDTH, D_MODEL), jnp.float32),
        "bfc": jnp.zeros((1, MLP_WIDTH), jnp.float32),
        "wproj": 0.05 * jax.random.normal(ks[3], (D_MODEL, MLP_WIDTH), jnp.float32),
        "bproj": jnp.zeros((1, D_MODEL), jnp.float32),
    }

    x = jax.random.normal(ks[4], (SEQ, BATCH, D_MODEL), jnp.float32)   # (L, N, E)

    block = jax.jit(residual_attention_block)
    out = jax.block_until_ready(block(x, params))
    ref = jax.block_until_ready(_ref_block(x, params))

    # tolerance relaxed vs v1 because of pl.reciprocal(approx=True) in softmax (~1e-3 rel.)
    np.testing.assert_allclose(np.asarray(out), np.asarray(ref), atol=2e-3, rtol=2e-3)
    assert out.shape == x.shape and out.dtype == x.dtype
    print("KERNEL_OK")
</pallas_src>

<mosaic_0001>
module attributes {stable_mosaic.version = 11 : i64} {
  func.func @_rab_kernel(%arg0: memref<16x32xf32, #tpu.memory_space<vmem>>, %arg1: memref<1x32xf32, #tpu.memory_space<vmem>>, %arg2: memref<1x32xf32, #tpu.memory_space<vmem>>, %arg3: memref<32x96xf32, #tpu.memory_space<vmem>>, %arg4: memref<1x96xf32, #tpu.memory_space<vmem>>, %arg5: memref<32x32xf32, #tpu.memory_space<vmem>>, %arg6: memref<1x32xf32, #tpu.memory_space<vmem>>, %arg7: memref<1x32xf32, #tpu.memory_space<vmem>>, %arg8: memref<1x32xf32, #tpu.memory_space<vmem>>, %arg9: memref<32x128xf32, #tpu.memory_space<vmem>>, %arg10: memref<1x128xf32, #tpu.memory_space<vmem>>, %arg11: memref<128x32xf32, #tpu.memory_space<vmem>>, %arg12: memref<1x32xf32, #tpu.memory_space<vmem>>, %arg13: memref<16x32xf32, #tpu.memory_space<vmem>>) attributes {dimension_semantics = [], scalar_prefetch = 0 : i64, scratch_operands = 0 : i64, tpu.core_type = #tpu.core_type<tc>} {
    %c0 = arith.constant 0 : index
    %c0_0 = arith.constant 0 : index
    %0 = vector.load %arg0[%c0, %c0_0] : memref<16x32xf32, #tpu.memory_space<vmem>>, vector<16x32xf32>
    %c0_1 = arith.constant 0 : index
    %c0_2 = arith.constant 0 : index
    %1 = vector.load %arg1[%c0_1, %c0_2] : memref<1x32xf32, #tpu.memory_space<vmem>>, vector<1x32xf32>
    %c0_3 = arith.constant 0 : index
    %c0_4 = arith.constant 0 : index
    %2 = vector.load %arg2[%c0_3, %c0_4] : memref<1x32xf32, #tpu.memory_space<vmem>>, vector<1x32xf32>
    %cst = arith.constant dense<0.000000e+00> : vector<16xf32>
    %3 = vector.multi_reduction <add>, %0, %cst [1] : vector<16x32xf32> to vector<16xf32>
    %4 = vector.shape_cast %3 : vector<16xf32> to vector<16x1xf32>
    %cst_5 = arith.constant 3.200000e+01 : f32
    %5 = vector.broadcast %cst_5 : f32 to vector<16x1xf32>
    %6 = arith.divf %4, %5 : vector<16x1xf32>
    %7 = vector.broadcast %6 : vector<16x1xf32> to vector<16x32xf32>
    %8 = arith.subf %0, %7 : vector<16x32xf32>
    %9 = arith.mulf %8, %8 : vector<16x32xf32>
    %cst_6 = arith.constant dense<0.000000e+00> : vector<16xf32>
    %10 = vector.multi_reduction <add>, %9, %cst_6 [1] : vector<16x32xf32> to vector<16xf32>
    %11 = vector.shape_cast %10 : vector<16xf32> to vector<16x1xf32>
    %cst_7 = arith.constant 3.200000e+01 : f32
    %12 = vector.broadcast %cst_7 : f32 to vector<16x1xf32>
    %13 = arith.divf %11, %12 : vector<16x1xf32>
    %cst_8 = arith.constant 9.99999974E-6 : f32
    %14 = vector.broadcast %cst_8 : f32 to vector<16x1xf32>
    %15 = arith.addf %13, %14 : vector<16x1xf32>
    %16 = math.rsqrt %15 : vector<16x1xf32>
    %17 = vector.broadcast %16 : vector<16x1xf32> to vector<16x32xf32>
    %18 = arith.mulf %8, %17 : vector<16x32xf32>
    %19 = vector.broadcast %1 : vector<1x32xf32> to vector<16x32xf32>
    %20 = arith.mulf %18, %19 : vector<16x32xf32>
    %21 = vector.broadcast %2 : vector<1x32xf32> to vector<16x32xf32>
    %22 = arith.addf %20, %21 : vector<16x32xf32>
    %c0_9 = arith.constant 0 : index
    %c0_10 = arith.constant 0 : index
    %23 = vector.load %arg3[%c0_9, %c0_10] : memref<32x96xf32, #tpu.memory_space<vmem>>, vector<32x96xf32>
    %cst_11 = arith.constant dense<0.000000e+00> : vector<16x96xf32>
    %24 = tpu.matmul %22, %23, %cst_11 {dimension_numbers = #tpu.dot_dimension_numbers<[1], [0], [0], [1], [0, 0, 1, 1], [], []>} : vector<16x32xf32>, vector<32x96xf32>, vector<16x96xf32> -> vector<16x96xf32>
    %c0_12 = arith.constant 0 : index
    %c0_13 = arith.constant 0 : index
    %25 = vector.load %arg4[%c0_12, %c0_13] : memref<1x96xf32, #tpu.memory_space<vmem>>, vector<1x96xf32>
    %26 = vector.broadcast %25 : vector<1x96xf32> to vector<16x96xf32>
    %27 = arith.addf %24, %26 : vector<16x96xf32>
    %28 = vector.extract_strided_slice %27 {offsets = [0, 0], sizes = [16, 8], strides = [1, 1]} : vector<16x96xf32> to vector<16x8xf32>
    %cst_14 = arith.constant 0.353553385 : f32
    %29 = vector.broadcast %cst_14 : f32 to vector<16x8xf32>
    %30 = arith.mulf %28, %29 : vector<16x8xf32>
    %31 = vector.shape_cast %30 : vector<16x8xf32> to vector<2x8x8xf32>
    %32 = vector.extract_strided_slice %27 {offsets = [0, 32], sizes = [16, 8], strides = [1, 1]} : vector<16x96xf32> to vector<16x8xf32>
    %33 = vector.shape_cast %32 : vector<16x8xf32> to vector<2x8x8xf32>
    %34 = vector.extract_strided_slice %27 {offsets = [0, 64], sizes = [16, 8], strides = [1, 1]} : vector<16x96xf32> to vector<16x8xf32>
    %35 = vector.shape_cast %34 : vector<16x8xf32> to vector<2x8x8xf32>
    "tpu.trace_start"() <{level = 10 : i32, message = "nld,nmd->nlm"}> : () -> ()
    %cst_15 = arith.constant dense<0.000000e+00> : vector<2x8x8xf32>
    %36 = tpu.matmul %31, %33, %cst_15 {dimension_numbers = #tpu.dot_dimension_numbers<[2], [2], [1], [1], [0, 0, 0, 1, 1, 1], [0], [0]>} : vector<2x8x8xf32>, vector<2x8x8xf32>, vector<2x8x8xf32> -> vector<2x8x8xf32>
    "tpu.trace_stop"() : () -> ()
    %cst_16 = arith.constant dense<0xFF800000> : vector<2x8xf32>
    %37 = vector.multi_reduction <maximumf>, %36, %cst_16 [2] : vector<2x8x8xf32> to vector<2x8xf32>
    %38 = vector.shape_cast %37 : vector<2x8xf32> to vector<2x8x1xf32>
    %39 = vector.broadcast %38 : vector<2x8x1xf32> to vector<2x8x8xf32>
    %40 = arith.subf %36, %39 : vector<2x8x8xf32>
    %41 = math.exp %40 : vector<2x8x8xf32>
    %cst_17 = arith.constant dense<0.000000e+00> : vector<2x8xf32>
    %42 = vector.multi_reduction <add>, %41, %cst_17 [2] : vector<2x8x8xf32> to vector<2x8xf32>
    %43 = vector.shape_cast %42 : vector<2x8xf32> to vector<2x8x1xf32>
    %44 = tpu.reciprocal %43 {approx = true} : vector<2x8x1xf32> -> vector<2x8x1xf32>
    %45 = vector.broadcast %44 : vector<2x8x1xf32> to vector<2x8x8xf32>
    %46 = arith.mulf %41, %45 : vector<2x8x8xf32>
    "tpu.trace_start"() <{level = 10 : i32, message = "nlm,nmd->nld"}> : () -> ()
    %cst_18 = arith.constant dense<0.000000e+00> : vector<2x8x8xf32>
    %47 = tpu.matmul %46, %35, %cst_18 {dimension_numbers = #tpu.dot_dimension_numbers<[2], [1], [1], [2], [0, 0, 0, 1, 1, 2], [0], [0]>} : vector<2x8x8xf32>, vector<2x8x8xf32>, vector<2x8x8xf32> -> vector<2x8x8xf32>
    "tpu.trace_stop"() : () -> ()
    %48 = vector.shape_cast %47 : vector<2x8x8xf32> to vector<16x8xf32>
    %49 = vector.extract_strided_slice %27 {offsets = [0, 8], sizes = [16, 8], strides = [1, 1]} : vector<16x96xf32> to vector<16x8xf32>
    %cst_19 = arith.constant 0.353553385 : f32
    %50 = vector.broadcast %cst_19 : f32 to vector<16x8xf32>
    %51 = arith.mulf %49, %50 : vector<16x8xf32>
    %52 = vector.shape_cast %51 : vector<16x8xf32> to vector<2x8x8xf32>
    %53 = vector.extract_strided_slice %27 {offsets = [0, 40], sizes = [16, 8], strides = [1, 1]} : vector<16x96xf32> to vector<16x8xf32>
    %54 = vector.shape_cast %53 : vector<16x8xf32> to vector<2x8x8xf32>
    %55 = vector.extract_strided_slice %27 {offsets = [0, 72], sizes = [16, 8], strides = [1, 1]} : vector<16x96xf32> to vector<16x8xf32>
    %56 = vector.shape_cast %55 : vector<16x8xf32> to vector<2x8x8xf32>
    "tpu.trace_start"() <{level = 10 : i32, message = "nld,nmd->nlm"}> : () -> ()
    %cst_20 = arith.constant dense<0.000000e+00> : vector<2x8x8xf32>
    %57 = tpu.matmul %52, %54, %cst_20 {dimension_numbers = #tpu.dot_dimension_numbers<[2], [2], [1], [1], [0, 0, 0, 1, 1, 1], [0], [0]>} : vector<2x8x8xf32>, vector<2x8x8xf32>, vector<2x8x8xf32> -> vector<2x8x8xf32>
    "tpu.trace_stop"() : () -> ()
    %cst_21 = arith.constant dense<0xFF800000> : vector<2x8xf32>
    %58 = vector.multi_reduction <maximumf>, %57, %cst_21 [2] : vector<2x8x8xf32> to vector<2x8xf32>
    %59 = vector.shape_cast %58 : vector<2x8xf32> to vector<2x8x1xf32>
    %60 = vector.broadcast %59 : vector<2x8x1xf32> to vector<2x8x8xf32>
    %61 = arith.subf %57, %60 : vector<2x8x8xf32>
    %62 = math.exp %61 : vector<2x8x8xf32>
    %cst_22 = arith.constant dense<0.000000e+00> : vector<2x8xf32>
    %63 = vector.multi_reduction <add>, %62, %cst_22 [2] : vector<2x8x8xf32> to vector<2x8xf32>
    %64 = vector.shape_cast %63 : vector<2x8xf32> to vector<2x8x1xf32>
    %65 = tpu.reciprocal %64 {approx = true} : vector<2x8x1xf32> -> vector<2x8x1xf32>
    %66 = vector.broadcast %65 : vector<2x8x1xf32> to vector<2x8x8xf32>
    %67 = arith.mulf %62, %66 : vector<2x8x8xf32>
    "tpu.trace_start"() <{level = 10 : i32, message = "nlm,nmd->nld"}> : () -> ()
    %cst_23 = arith.constant dense<0.000000e+00> : vector<2x8x8xf32>
    %68 = tpu.matmul %67, %56, %cst_23 {dimension_numbers = #tpu.dot_dimension_numbers<[2], [1], [1], [2], [0, 0, 0, 1, 1, 2], [0], [0]>} : vector<2x8x8xf32>, vector<2x8x8xf32>, vector<2x8x8xf32> -> vector<2x8x8xf32>
    "tpu.trace_stop"() : () -> ()
    %69 = vector.shape_cast %68 : vector<2x8x8xf32> to vector<16x8xf32>
    %70 = vector.extract_strided_slice %27 {offsets = [0, 16], sizes = [16, 8], strides = [1, 1]} : vector<16x96xf32> to vector<16x8xf32>
    %cst_24 = arith.constant 0.353553385 : f32
    %71 = vector.broadcast %cst_24 : f32 to vector<16x8xf32>
    %72 = arith.mulf %70, %71 : vector<16x8xf32>
    %73 = vector.shape_cast %72 : vector<16x8xf32> to vector<2x8x8xf32>
    %74 = vector.extract_strided_slice %27 {offsets = [0, 48], sizes = [16, 8], strides = [1, 1]} : vector<16x96xf32> to vector<16x8xf32>
    %75 = vector.shape_cast %74 : vector<16x8xf32> to vector<2x8x8xf32>
    %76 = vector.extract_strided_slice %27 {offsets = [0, 80], sizes = [16, 8], strides = [1, 1]} : vector<16x96xf32> to vector<16x8xf32>
    %77 = vector.shape_cast %76 : vector<16x8xf32> to vector<2x8x8xf32>
    "tpu.trace_start"() <{level = 10 : i32, message = "nld,nmd->nlm"}> : () -> ()
    %cst_25 = arith.constant dense<0.000000e+00> : vector<2x8x8xf32>
    %78 = tpu.matmul %73, %75, %cst_25 {dimension_numbers = #tpu.dot_dimension_numbers<[2], [2], [1], [1], [0, 0, 0, 1, 1, 1], [0], [0]>} : vector<2x8x8xf32>, vector<2x8x8xf32>, vector<2x8x8xf32> -> vector<2x8x8xf32>
    "tpu.trace_stop"() : () -> ()
    %cst_26 = arith.constant dense<0xFF800000> : vector<2x8xf32>
    %79 = vector.multi_reduction <maximumf>, %78, %cst_26 [2] : vector<2x8x8xf32> to vector<2x8xf32>
    %80 = vector.shape_cast %79 : vector<2x8xf32> to vector<2x8x1xf32>
    %81 = vector.broadcast %80 : vector<2x8x1xf32> to vector<2x8x8xf32>
    %82 = arith.subf %78, %81 : vector<2x8x8xf32>
    %83 = math.exp %82 : vector<2x8x8xf32>
    %cst_27 = arith.constant dense<0.000000e+00> : vector<2x8xf32>
    %84 = vector.multi_reduction <add>, %83, %cst_27 [2] : vector<2x8x8xf32> to vector<2x8xf32>
    %85 = vector.shape_cast %84 : vector<2x8xf32> to vector<2x8x1xf32>
    %86 = tpu.reciprocal %85 {approx = true} : vector<2x8x1xf32> -> vector<2x8x1xf32>
    %87 = vector.broadcast %86 : vector<2x8x1xf32> to vector<2x8x8xf32>
    %88 = arith.mulf %83, %87 : vector<2x8x8xf32>
    "tpu.trace_start"() <{level = 10 : i32, message = "nlm,nmd->nld"}> : () -> ()
    %cst_28 = arith.constant dense<0.000000e+00> : vector<2x8x8xf32>
    %89 = tpu.matmul %88, %77, %cst_28 {dimension_numbers = #tpu.dot_dimension_numbers<[2], [1], [1], [2], [0, 0, 0, 1, 1, 2], [0], [0]>} : vector<2x8x8xf32>, vector<2x8x8xf32>, vector<2x8x8xf32> -> vector<2x8x8xf32>
    "tpu.trace_stop"() : () -> ()
    %90 = vector.shape_cast %89 : vector<2x8x8xf32> to vector<16x8xf32>
    %91 = vector.extract_strided_slice %27 {offsets = [0, 24], sizes = [16, 8], strides = [1, 1]} : vector<16x96xf32> to vector<16x8xf32>
    %cst_29 = arith.constant 0.353553385 : f32
    %92 = vector.broadcast %cst_29 : f32 to vector<16x8xf32>
    %93 = arith.mulf %91, %92 : vector<16x8xf32>
    %94 = vector.shape_cast %93 : vector<16x8xf32> to vector<2x8x8xf32>
    %95 = vector.extract_strided_slice %27 {offsets = [0, 56], sizes = [16, 8], strides = [1, 1]} : vector<16x96xf32> to vector<16x8xf32>
    %96 = vector.shape_cast %95 : vector<16x8xf32> to vector<2x8x8xf32>
    %97 = vector.extract_strided_slice %27 {offsets = [0, 88], sizes = [16, 8], strides = [1, 1]} : vector<16x96xf32> to vector<16x8xf32>
    %98 = vector.shape_cast %97 : vector<16x8xf32> to vector<2x8x8xf32>
    "tpu.trace_start"() <{level = 10 : i32, message = "nld,nmd->nlm"}> : () -> ()
    %cst_30 = arith.constant dense<0.000000e+00> : vector<2x8x8xf32>
    %99 = tpu.matmul %94, %96, %cst_30 {dimension_numbers = #tpu.dot_dimension_numbers<[2], [2], [1], [1], [0, 0, 0, 1, 1, 1], [0], [0]>} : vector<2x8x8xf32>, vector<2x8x8xf32>, vector<2x8x8xf32> -> vector<2x8x8xf32>
    "tpu.trace_stop"() : () -> ()
    %cst_31 = arith.constant dense<0xFF800000> : vector<2x8xf32>
    %100 = vector.multi_reduction <maximumf>, %99, %cst_31 [2] : vector<2x8x8xf32> to vector<2x8xf32>
    %101 = vector.shape_cast %100 : vector<2x8xf32> to vector<2x8x1xf32>
    %102 = vector.broadcast %101 : vector<2x8x1xf32> to vector<2x8x8xf32>
    %103 = arith.subf %99, %102 : vector<2x8x8xf32>
    %104 = math.exp %103 : vector<2x8x8xf32>
    %cst_32 = arith.constant dense<0.000000e+00> : vector<2x8xf32>
    %105 = vector.multi_reduction <add>, %104, %cst_32 [2] : vector<2x8x8xf32> to vector<2x8xf32>
    %106 = vector.shape_cast %105 : vector<2x8xf32> to vector<2x8x1xf32>
    %107 = tpu.reciprocal %106 {approx = true} : vector<2x8x1xf32> -> vector<2x8x1xf32>
    %108 = vector.broadcast %107 : vector<2x8x1xf32> to vector<2x8x8xf32>
    %109 = arith.mulf %104, %108 : vector<2x8x8xf32>
    "tpu.trace_start"() <{level = 10 : i32, message = "nlm,nmd->nld"}> : () -> ()
    %cst_33 = arith.constant dense<0.000000e+00> : vector<2x8x8xf32>
    %110 = tpu.matmul %109, %98, %cst_33 {dimension_numbers = #tpu.dot_dimension_numbers<[2], [1], [1], [2], [0, 0, 0, 1, 1, 2], [0], [0]>} : vector<2x8x8xf32>, vector<2x8x8xf32>, vector<2x8x8xf32> -> vector<2x8x8xf32>
    "tpu.trace_stop"() : () -> ()
    %111 = vector.shape_cast %110 : vector<2x8x8xf32> to vector<16x8xf32>
    %112 = tpu.concatenate %48, %69, %90, %111 in 1 : vector<16x8xf32>, vector<16x8xf32>, vector<16x8xf32>, vector<16x8xf32> -> vector<16x32xf32>
    %c0_34 = arith.constant 0 : index
    %c0_35 = arith.constant 0 : index
    %113 = vector.load %arg5[%c0_34, %c0_35] : memref<32x32xf32, #tpu.memory_space<vmem>>, vector<32x32xf32>
    %cst_36 = arith.constant dense<0.000000e+00> : vector<16x32xf32>
    %114 = tpu.matmul %112, %113, %cst_36 {dimension_numbers = #tpu.dot_dimension_numbers<[1], [0], [0], [1], [0, 0, 1, 1], [], []>} : vector<16x32xf32>, vector<32x32xf32>, vector<16x32xf32> -> vector<16x32xf32>
    %c0_37 = arith.constant 0 : index
    %c0_38 = arith.constant 0 : index
    %115 = vector.load %arg6[%c0_37, %c0_38] : memref<1x32xf32, #tpu.memory_space<vmem>>, vector<1x32xf32>
    %116 = vector.broadcast %115 : vector<1x32xf32> to vector<16x32xf32>
    %117 = arith.addf %114, %116 : vector<16x32xf32>
    %118 = arith.addf %0, %117 : vector<16x32xf32>
    %c0_39 = arith.constant 0 : index
    %c0_40 = arith.constant 0 : index
    %119 = vector.load %arg7[%c0_39, %c0_40] : memref<1x32xf32, #tpu.memory_space<vmem>>, vector<1x32xf32>
    %c0_41 = arith.constant 0 : index
    %c0_42 = arith.constant 0 : index
    %120 = vector.load %arg8[%c0_41, %c0_42] : memref<1x32xf32, #tpu.memory_space<vmem>>, vector<1x32xf32>
    %cst_43 = arith.constant dense<0.000000e+00> : vector<16xf32>
    %121 = vector.multi_reduction <add>, %118, %cst_43 [1] : vector<16x32xf32> to vector<16xf32>
    %122 = vector.shape_cast %121 : vector<16xf32> to vector<16x1xf32>
    %cst_44 = arith.constant 3.200000e+01 : f32
    %123 = vector.broadcast %cst_44 : f32 to vector<16x1xf32>
    %124 = arith.divf %122, %123 : vector<16x1xf32>
    %125 = vector.broadcast %124 : vector<16x1xf32> to vector<16x32xf32>
    %126 = arith.subf %118, %125 : vector<16x32xf32>
    %127 = arith.mulf %126, %126 : vector<16x32xf32>
    %cst_45 = arith.constant dense<0.000000e+00> : vector<16xf32>
    %128 = vector.multi_reduction <add>, %127, %cst_45 [1] : vector<16x32xf32> to vector<16xf32>
    %129 = vector.shape_cast %128 : vector<16xf32> to vector<16x1xf32>
    %cst_46 = arith.constant 3.200000e+01 : f32
    %130 = vector.broadcast %cst_46 : f32 to vector<16x1xf32>
    %131 = arith.divf %129, %130 : vector<16x1xf32>
    %cst_47 = arith.constant 9.99999974E-6 : f32
    %132 = vector.broadcast %cst_47 : f32 to vector<16x1xf32>
    %133 = arith.addf %131, %132 : vector<16x1xf32>
    %134 = math.rsqrt %133 : vector<16x1xf32>
    %135 = vector.broadcast %134 : vector<16x1xf32> to vector<16x32xf32>
    %136 = arith.mulf %126, %135 : vector<16x32xf32>
    %137 = vector.broadcast %119 : vector<1x32xf32> to vector<16x32xf32>
    %138 = arith.mulf %136, %137 : vector<16x32xf32>
    %139 = vector.broadcast %120 : vector<1x32xf32> to vector<16x32xf32>
    %140 = arith.addf %138, %139 : vector<16x32xf32>
    %c0_48 = arith.constant 0 : index
    %c0_49 = arith.constant 0 : index
    %141 = vector.load %arg9[%c0_48, %c0_49] : memref<32x128xf32, #tpu.memory_space<vmem>>, vector<32x128xf32>
    %cst_50 = arith.constant dense<0.000000e+00> : vector<16x128xf32>
    %142 = tpu.matmul %140, %141, %cst_50 {dimension_numbers = #tpu.dot_dimension_numbers<[1], [0], [0], [1], [0, 0, 1, 1], [], []>} : vector<16x32xf32>, vector<32x128xf32>, vector<16x128xf32> -> vector<16x128xf32>
    %c0_51 = arith.constant 0 : index
    %c0_52 = arith.constant 0 : index
    %143 = vector.load %arg10[%c0_51, %c0_52] : memref<1x128xf32, #tpu.memory_space<vmem>>, vector<1x128xf32>
    %144 = vector.broadcast %143 : vector<1x128xf32> to vector<16x128xf32>
    %145 = arith.addf %142, %144 : vector<16x128xf32>
    %cst_53 = arith.constant 5.000000e-01 : f32
    %146 = vector.broadcast %cst_53 : f32 to vector<16x128xf32>
    %147 = arith.mulf %146, %145 : vector<16x128xf32>
    %cst_54 = arith.constant 0.707106769 : f32
    %148 = vector.broadcast %cst_54 : f32 to vector<16x128xf32>
    %149 = arith.mulf %145, %148 : vector<16x128xf32>
    %cst_55 = arith.constant 0.000000e+00 : f32
    %150 = vector.broadcast %cst_55 : f32 to vector<16x128xf32>
    %151 = arith.cmpf oge, %149, %150 : vector<16x128xf32>
    %cst_56 = arith.constant 1.000000e+00 : f32
    %cst_57 = arith.constant -1.000000e+00 : f32
    %152 = vector.broadcast %cst_56 : f32 to vector<16x128xf32>
    %153 = vector.broadcast %cst_57 : f32 to vector<16x128xf32>
    %154 = arith.select %151, %152, %153 : vector<16x128xi1>, vector<16x128xf32>
    %155 = math.absf %149 : vector<16x128xf32>
    %cst_58 = arith.constant 0.327591091 : f32
    %156 = vector.broadcast %cst_58 : f32 to vector<16x128xf32>
    %157 = arith.mulf %156, %155 : vector<16x128xf32>
    %cst_59 = arith.constant 1.000000e+00 : f32
    %158 = vector.broadcast %cst_59 : f32 to vector<16x128xf32>
    %159 = arith.addf %158, %157 : vector<16x128xf32>
    %cst_60 = arith.constant 1.000000e+00 : f32
    %160 = vector.broadcast %cst_60 : f32 to vector<16x128xf32>
    %161 = arith.divf %160, %159 : vector<16x128xf32>
    %cst_61 = arith.constant 1.06140542 : f32
    %162 = vector.broadcast %cst_61 : f32 to vector<16x128xf32>
    %163 = arith.mulf %162, %161 : vector<16x128xf32>
    %cst_62 = arith.constant -1.45315206 : f32
    %164 = vector.broadcast %cst_62 : f32 to vector<16x128xf32>
    %165 = arith.addf %163, %164 : vector<16x128xf32>
    %166 = arith.mulf %165, %161 : vector<16x128xf32>
    %cst_63 = arith.constant 1.42141378 : f32
    %167 = vector.broadcast %cst_63 : f32 to vector<16x128xf32>
    %168 = arith.addf %166, %167 : vector<16x128xf32>
    %169 = arith.mulf %168, %161 : vector<16x128xf32>
    %cst_64 = arith.constant -0.284496725 : f32
    %170 = vector.broadcast %cst_64 : f32 to vector<16x128xf32>
    %171 = arith.addf %169, %170 : vector<16x128xf32>
    %172 = arith.mulf %171, %161 : vector<16x128xf32>
    %cst_65 = arith.constant 0.254829586 : f32
    %173 = vector.broadcast %cst_65 : f32 to vector<16x128xf32>
    %174 = arith.addf %172, %173 : vector<16x128xf32>
    %175 = arith.mulf %174, %161 : vector<16x128xf32>
    %cst_66 = arith.constant 0.000000e+00 : f32
    %176 = vector.broadcast %cst_66 : f32 to vector<16x128xf32>
    %177 = arith.subf %176, %155 : vector<16x128xf32>
    %178 = arith.mulf %177, %155 : vector<16x128xf32>
    %179 = math.exp %178 : vector<16x128xf32>
    %180 = arith.mulf %175, %179 : vector<16x128xf32>
    %cst_67 = arith.constant 1.000000e+00 : f32
    %181 = vector.broadcast %cst_67 : f32 to vector<16x128xf32>
    %182 = arith.subf %181, %180 : vector<16x128xf32>
    %183 = arith.mulf %154, %182 : vector<16x128xf32>
    %cst_68 = arith.constant 1.000000e+00 : f32
    %184 = vector.broadcast %cst_68 : f32 to vector<16x128xf32>
    %185 = arith.addf %184, %183 : vector<16x128xf32>
    %186 = arith.mulf %147, %185 : vector<16x128xf32>
    %c0_69 = arith.constant 0 : index
    %c0_70 = arith.constant 0 : index
    %187 = vector.load %arg11[%c0_69, %c0_70] : memref<128x32xf32, #tpu.memory_space<vmem>>, vector<128x32xf32>
    %cst_71 = arith.constant dense<0.000000e+00> : vector<16x32xf32>
    %188 = tpu.matmul %186, %187, %cst_71 {dimension_numbers = #tpu.dot_dimension_numbers<[1], [0], [0], [1], [0, 0, 1, 1], [], []>} : vector<16x128xf32>, vector<128x32xf32>, vector<16x32xf32> -> vector<16x32xf32>
    %c0_72 = arith.constant 0 : index
    %c0_73 = arith.constant 0 : index
    %189 = vector.load %arg12[%c0_72, %c0_73] : memref<1x32xf32, #tpu.memory_space<vmem>>, vector<1x32xf32>
    %190 = vector.broadcast %189 : vector<1x32xf32> to vector<16x32xf32>
    %191 = arith.addf %188, %190 : vector<16x32xf32>
    %192 = arith.addf %118, %191 : vector<16x32xf32>
    %c0_74 = arith.constant 0 : index
    %c0_75 = arith.constant 0 : index
    %193 = vector.load %arg13[%c0_74, %c0_75] : memref<16x32xf32, #tpu.memory_space<vmem>>, vector<16x32xf32>
    tpu.vector_store %arg13[%c0_74, %c0_75], %192 {strides = array<i32>} : memref<16x32xf32, #tpu.memory_space<vmem>>, vector<16x32xf32>,
    return
  }
}

</mosaic_0001>

<llo_original>
// kernel: residual_attention_block.1
$region0: #{residual_attention_block.1}
  #allocation0 [shape = 'u32[]', space=smem, size = 0x4, offset = 0x4, fixed_abs, tag = 'smem constant byte address 0x4 - core index']
  #allocation1 [shape = 'u32[144,128]{1,0:T(1,128)}', space=vmem, size = 0x12000, scoped, tag = 'internal scratch']
  %s0 = inlined_call_operand.vmem [shape: f32[16,32], index: 0, kind: input, shape index: {}]
  %s1 = inlined_call_operand.vmem [shape: f32[1,32], index: 1, kind: input, shape index: {}]
  %s2 = inlined_call_operand.vmem [shape: f32[1,32], index: 2, kind: input, shape index: {}]
  %s3 = inlined_call_operand.vmem [shape: f32[32,96], index: 3, kind: input, shape index: {}]
  %s4 = inlined_call_operand.vmem [shape: f32[1,96], index: 4, kind: input, shape index: {}]
  %s5 = inlined_call_operand.vmem [shape: f32[32,32], index: 5, kind: input, shape index: {}]
  %s6 = inlined_call_operand.vmem [shape: f32[1,32], index: 6, kind: input, shape index: {}]
  %s7 = inlined_call_operand.vmem [shape: f32[1,32], index: 7, kind: input, shape index: {}]
  %s8 = inlined_call_operand.vmem [shape: f32[1,32], index: 8, kind: input, shape index: {}]
  %s9 = inlined_call_operand.vmem [shape: f32[32,128], index: 9, kind: input, shape index: {}]
  %s10 = inlined_call_operand.vmem [shape: f32[1,128], index: 10, kind: input, shape index: {}]
  %s11 = inlined_call_operand.vmem [shape: f32[128,32], index: 11, kind: input, shape index: {}]
  %s12 = inlined_call_operand.vmem [shape: f32[1,32], index: 12, kind: input, shape index: {}]
  %s13 = inlined_call_operand.vmem [shape: f32[16,32], index: 13, kind: output, shape index: {}]
  %s14 = sld [smem:[#allocation0]]
  $region62: #{residual_attention_block.1} parent=0
    _
  %s16 = ssub.s32 1, %s14
  %s17 = scalar_select 0, %s16, %s14
  // Predicated region
  $region2: #{residual_attention_block.1} parent=0 // pred_check
    _
  $region3: #{residual_attention_block.1} parent=0 // pred_check_branch
    %19 = sbr.rel (0) target = $region5
  $region4: #{residual_attention_block.1} parent=0 // pred_region
    _
  $region5: #{residual_attention_block.1} parent=0 // pred_fallthru
    _
  // Predicated region
  $region6: #{residual_attention_block.1} parent=0 // pred_check
    _
  $region7: #{residual_attention_block.1} parent=0 // pred_check_branch
    %21 = sbr.rel (0) target = $region9
  $region8: #{residual_attention_block.1} parent=0 // pred_region
    _
  $region9: #{residual_attention_block.1} parent=0 // pred_fallthru
    _
  // Predicated region
  $region10: #{residual_attention_block.1} parent=0 // pred_check
    _
  $region11: #{residual_attention_block.1} parent=0 // pred_check_branch
    %23 = sbr.rel (0) target = $region13
  $region12: #{residual_attention_block.1} parent=0 // pred_region
    _
  $region13: #{residual_attention_block.1} parent=0 // pred_fallthru
    _
  // Predicated region
  $region14: #{residual_attention_block.1} parent=0 // pred_check
    _
  $region15: #{residual_attention_block.1} parent=0 // pred_check_branch
    %25 = sbr.rel (0) target = $region17
  $region16: #{residual_attention_block.1} parent=0 // pred_region
    _
  $region17: #{residual_attention_block.1} parent=0 // pred_fallthru
    _
  // Predicated region
  $region18: #{residual_attention_block.1} parent=0 // pred_check
    _
  $region19: #{residual_attention_block.1} parent=0 // pred_check_branch
    %27 = sbr.rel (0) target = $region21
  $region20: #{residual_attention_block.1} parent=0 // pred_region
    _
  $region21: #{residual_attention_block.1} parent=0 // pred_fallthru
    _
  // Predicated region
  $region22: #{residual_attention_block.1} parent=0 // pred_check
    _
  $region23: #{residual_attention_block.1} parent=0 // pred_check_branch
    %29 = sbr.rel (0) target = $region25
  $region24: #{residual_attention_block.1} parent=0 // pred_region
    _
  $region25: #{residual_attention_block.1} parent=0 // pred_fallthru
    _
  // Predicated region
  $region26: #{residual_attention_block.1} parent=0 // pred_check
    _
  $region27: #{residual_attention_block.1} parent=0 // pred_check_branch
    %31 = sbr.rel (0) target = $region29
  $region28: #{residual_attention_block.1} parent=0 // pred_region
    _
  $region29: #{residual_attention_block.1} parent=0 // pred_fallthru
    _
  // Predicated region
  $region30: #{residual_attention_block.1} parent=0 // pred_check
    _
  $region31: #{residual_attention_block.1} parent=0 // pred_check_branch
    %33 = sbr.rel (0) target = $region33
  $region32: #{residual_attention_block.1} parent=0 // pred_region
    _
  $region33: #{residual_attention_block.1} parent=0 // pred_fallthru
    _
  // Predicated region
  $region34: #{residual_attention_block.1} parent=0 // pred_check
    _
  $region35: #{residual_attention_block.1} parent=0 // pred_check_branch
    %35 = sbr.rel (0) target = $region37
  $region36: #{residual_attention_block.1} parent=0 // pred_region
    _
  $region37: #{residual_attention_block.1} parent=0 // pred_fallthru
    _
  // Predicated region
  $region38: #{residual_attention_block.1} parent=0 // pred_check
    _
  $region39: #{residual_attention_block.1} parent=0 // pred_check_branch
    %37 = sbr.rel (0) target = $region41
  $region40: #{residual_attention_block.1} parent=0 // pred_region
    _
  $region41: #{residual_attention_block.1} parent=0 // pred_fallthru
    _
  // Predicated region
  $region42: #{residual_attention_block.1} parent=0 // pred_check
    _
  $region43: #{residual_attention_block.1} parent=0 // pred_check_branch
    %39 = sbr.rel (0) target = $region45
  $region44: #{residual_attention_block.1} parent=0 // pred_region
    _
  $region45: #{residual_attention_block.1} parent=0 // pred_fallthru
    _
  // Predicated region
  $region46: #{residual_attention_block.1} parent=0 // pred_check
    _
  $region47: #{residual_attention_block.1} parent=0 // pred_check_branch
    %41 = sbr.rel (0) target = $region49
  $region48: #{residual_attention_block.1} parent=0 // pred_region
    _
  $region49: #{residual_attention_block.1} parent=0 // pred_fallthru
    _
  // Predicated region
  $region50: #{residual_attention_block.1} parent=0 // pred_check
    _
  $region51: #{residual_attention_block.1} parent=0 // pred_check_branch
    %43 = sbr.rel (0) target = $region53
  $region52: #{residual_attention_block.1} parent=0 // pred_region
    _
  $region53: #{residual_attention_block.1} parent=0 // pred_fallthru
    _
  %v44 = vld [vmem:[%s0] sm:$0xff]
  %v45 = vld [vmem:[%s0 + $0x8] sm:$0xff]
  %v46 = vld [vmem:[%s1] sm:$0x1]
  %v47 = vld [vmem:[%s2] sm:$0x1]
  %vm48 = vcmask 261120
  %v49 = vsel %vm48, %v44, 0.0
  %50 = vadd.xlane.f32.xlu0 %v49
  %v51 = vpop.xlane.xlu0 %50
  %v52 = vsel %vm48, %v45, 0.0
  %53 = vadd.xlane.f32.xlu0 %v52
  %v54 = vpop.xlane.xlu0 %53
  %v55 = vrcp.pop 32.0
  %v56 = vmul.f32 %v51, %v55
  %v57 = vmul.f32 %v54, %v55
  %v58 = vsub.f32 %v44, %v56
  %v59 = vsub.f32 %v45, %v57
  %v60 = vmul.f32 %v58, %v58
  %v61 = vmul.f32 %v59, %v59
  %v62 = vsel %vm48, %v60, 0.0
  %63 = vadd.xlane.f32.xlu0 %v62
  %v64 = vpop.xlane.xlu0 %63
  %v65 = vsel %vm48, %v61, 0.0
  %66 = vadd.xlane.f32.xlu0 %v65
  %v67 = vpop.xlane.xlu0 %66
  %v68 = vmul.f32 %v64, %v55
  %v69 = vmul.f32 %v67, %v55
  %v70 = vadd.f32 %v68, 1e-05
  %v71 = vadd.f32 %v69, 1e-05
  %v72 = vrsqrt.pop %v70
  %v73 = vrsqrt.pop %v71
  %v74 = vmul.f32 %v58, %v72
  %v75 = vmul.f32 %v59, %v73
  %v77 = vlaneseq
  %v78 = vshrl.u32 %v77, 7
  %v79 = vsub.s32 0, %v78
  %v80 = vrot.slane %v46, %v79
  %v82 = vmul.f32 %v74, %v80
  %v83 = vmul.f32 %v75, %v80
  %v85 = vlaneseq
  %v86 = vshrl.u32 %v85, 7
  %v87 = vsub.s32 0, %v86
  %v88 = vrot.slane %v47, %v87
  %v90 = vadd.f32 %v82, %v88
  %v91 = vadd.f32 %v83, %v88
  %v92 = vld [vmem:[%s3] sm:$0xff]
  %v93 = vld [vmem:[%s3 + $0x8] sm:$0xff]
  %v94 = vld [vmem:[%s3 + $0x10] sm:$0xff]
  %v95 = vld [vmem:[%s3 + $0x18] sm:$0xff]
  %v96 = vld [vmem:[%s4] sm:$0x1]
  %v98 = vlaneseq
  %v99 = vshrl.u32 %v98, 7
  %v100 = vsub.s32 0, %v99
  %v101 = vrot.slane %v96, %v100
  %v104 = vsel %vm48, %v90, 0
  %v107 = vsel %vm48, %v91, 0
  %109 = vmatprep.subr.mxu0 0.0
  %110 = vmatpush1.msra.mxu0 0.0
  %111 = vmatprep.subr.mxu0 0.0
  %112 = vmatpush1.msra.mxu0 0.0
  %113 = vmatprep.subr.mxu0 0.0
  %114 = vmatpush1.msra.mxu0 0.0
  %115 = vmatprep.subr.mxu0 0.0
  %116 = vmatpush1.msra.mxu0 0.0
  %117 = vmatprep.subr.mxu0 0.0
  %118 = vmatpush1.msra.mxu0 0.0
  %119 = vmatprep.subr.mxu0 0.0
  %120 = vmatpush1.msra.mxu0 0.0
  %121 = vmatprep.subr.mxu0 0.0
  %122 = vmatpush1.msra.mxu0 0.0
  %123 = vmatprep.subr.mxu0 0.0
  %124 = vmatpush1.msra.mxu0 0.0
  %125 = vmatprep.subr.mxu0 0.0
  %126 = vmatpush1.msra.mxu0 0.0
  %127 = vmatprep.subr.mxu0 0.0
  %128 = vmatpush1.msra.mxu0 0.0
  %129 = vmatprep.subr.mxu0 0.0
  %130 = vmatpush1.msra.mxu0 0.0
  %131 = vmatprep.subr.mxu0 0.0
  %132 = vmatpush1.msra.mxu0 0.0
  %133 = vmatprep.subr.mxu0 0.0
  %134 = vmatpush1.msra.mxu0 %v95
  %135 = vmatprep.subr.mxu0 0.0
  %136 = vmatpush1.msra.mxu0 %v94
  %137 = vmatprep.subr.mxu0 0.0
  %138 = vmatpush1.msra.mxu0 %v93
  %139 = vmatprep.subr.mxu0 0.0
  %140 = vmatpush1.msra.mxu0 %v92
  %141 = vmatprep.subr.mxu0 0.0
  %142 = vmatpush2.msra.mxu0 0.0
  %143 = vmatprep.subr.mxu0 0.0
  %144 = vmatpush2.msra.mxu0 0.0
  %145 = vmatprep.subr.mxu0 0.0
  %146 = vmatpush2.msra.mxu0 0.0
  %147 = vmatprep.subr.mxu0 0.0
  %148 = vmatpush2.msra.mxu0 0.0
  %149 = vmatprep.subr.mxu0 0.0
  %150 = vmatpush2.msra.mxu0 0.0
  %151 = vmatprep.subr.mxu0 0.0
  %152 = vmatpush2.msra.mxu0 0.0
  %153 = vmatprep.subr.mxu0 0.0
  %154 = vmatpush2.msra.mxu0 0.0
  %155 = vmatprep.subr.mxu0 0.0
  %156 = vmatpush2.msra.mxu0 0.0
  %157 = vmatprep.subr.mxu0 0.0
  %158 = vmatpush2.msra.mxu0 0.0
  %159 = vmatprep.subr.mxu0 0.0
  %160 = vmatpush2.msra.mxu0 0.0
  %161 = vmatprep.subr.mxu0 0.0
  %162 = vmatpush2.msra.mxu0 0.0
  %163 = vmatprep.subr.mxu0 0.0
  %164 = vmatpush2.msra.mxu0 0.0
  %165 = vmatprep.subr.mxu0 0.0
  %166 = vmatpush2.msra.mxu0 0.0
  %167 = vmatprep.subr.mxu0 0.0
  %168 = vmatpush2.msra.mxu0 0.0
  %169 = vmatprep.subr.mxu0 0.0
  %170 = vmatpush2.msra.mxu0 0.0
  %171 = vmatprep.subr.mxu0 0.0
  %172 = vmatpush2.msra.mxu0 0.0
  %173 = vmatprep.mubr.f32.mxu0 0.0
  %174 = vmatmul.mubr.f32.gmra.mxu0 %v104
  %v175 = vpop.f32.mrf.mxu0
  %v176 = vadd.f32 %v101, %v175
  %v177 = vpop.f32.mrf.mxu0
  %178 = vmatprep.mubr.f32.mxu0 0.0
  %179 = vmatmul.mubr.f32.gmra.mxu0 %v107
  %v180 = vpop.f32.mrf.mxu0
  %v181 = vadd.f32 %v101, %v180
  %v182 = vpop.f32.mrf.mxu0
  %183 = vdwg.mxu0
  %v184 = vmul.f32 %v176, 0.35355338
  %v185 = vmul.f32 %v181, 0.35355338
  %187 = vrot.lane.b32.xlu0 %v176, 96
  %v188 = vpop.permute.xlu0 %187
  %vm189 = vcmask 64512
  %v191 = vsel %vm189, %v184, 0
  %v193 = vsel %vm189, %v188, 0
  %195 = vmatprep.subr.mxu0 0.0
  %196 = vmatpush1.xpose.msra.mxu0 0.0
  %197 = vmatprep.subr.mxu0 0.0
  %198 = vmatpush1.xpose.msra.mxu0 0.0
  %199 = vmatprep.subr.mxu0 0.0
  %200 = vmatpush1.xpose.msra.mxu0 0.0
  %201 = vmatprep.subr.mxu0 0.0
  %202 = vmatpush1.xpose.msra.mxu0 0.0
  %203 = vmatprep.subr.mxu0 0.0
  %204 = vmatpush1.xpose.msra.mxu0 0.0
  %205 = vmatprep.subr.mxu0 0.0
  %206 = vmatpush1.xpose.msra.mxu0 0.0
  %207 = vmatprep.subr.mxu0 0.0
  %208 = vmatpush1.xpose.msra.mxu0 0.0
  %209 = vmatprep.subr.mxu0 0.0
  %210 = vmatpush1.xpose.msra.mxu0 0.0
  %211 = vmatprep.subr.mxu0 0.0
  %212 = vmatpush1.xpose.msra.mxu0 0.0
  %213 = vmatprep.subr.mxu0 0.0
  %214 = vmatpush1.xpose.msra.mxu0 0.0
  %215 = vmatprep.subr.mxu0 0.0
  %216 = vmatpush1.xpose.msra.mxu0 0.0
  %217 = vmatprep.subr.mxu0 0.0
  %218 = vmatpush1.xpose.msra.mxu0 0.0
  %219 = vmatprep.subr.mxu0 0.0
  %220 = vmatpush1.xpose.msra.mxu0 0.0
  %221 = vmatprep.subr.mxu0 0.0
  %222 = vmatpush1.xpose.msra.mxu0 0.0
  %223 = vmatprep.subr.mxu0 0.0
  %224 = vmatpush1.xpose.msra.mxu0 0.0
  %225 = vmatprep.subr.mxu0 0.0
  %226 = vmatpush1.xpose.msra.mxu0 %v193
  %227 = vmatprep.subr.mxu0 0.0
  %228 = vmatpush2.xpose.msra.mxu0 0.0
  %229 = vmatprep.subr.mxu0 0.0
  %230 = vmatpush2.xpose.msra.mxu0 0.0
  %231 = vmatprep.subr.mxu0 0.0
  %232 = vmatpush2.xpose.msra.mxu0 0.0
  %233 = vmatprep.subr.mxu0 0.0
  %234 = vmatpush2.xpose.msra.mxu0 0.0
  %235 = vmatprep.subr.mxu0 0.0
  %236 = vmatpush2.xpose.msra.mxu0 0.0
  %237 = vmatprep.subr.mxu0 0.0
  %238 = vmatpush2.xpose.msra.mxu0 0.0
  %239 = vmatprep.subr.mxu0 0.0
  %240 = vmatpush2.xpose.msra.mxu0 0.0
  %241 = vmatprep.subr.mxu0 0.0
  %242 = vmatpush2.xpose.msra.mxu0 0.0
  %243 = vmatprep.subr.mxu0 0.0
  %244 = vmatpush2.xpose.msra.mxu0 0.0
  %245 = vmatprep.subr.mxu0 0.0
  %246 = vmatpush2.xpose.msra.mxu0 0.0
  %247 = vmatprep.subr.mxu0 0.0
  %248 = vmatpush2.xpose.msra.mxu0 0.0
  %249 = vmatprep.subr.mxu0 0.0
  %250 = vmatpush2.xpose.msra.mxu0 0.0
  %251 = vmatprep.subr.mxu0 0.0
  %252 = vmatpush2.xpose.msra.mxu0 0.0
  %253 = vmatprep.subr.mxu0 0.0
  %254 = vmatpush2.xpose.msra.mxu0 0.0
  %255 = vmatprep.subr.mxu0 0.0
  %256 = vmatpush2.xpose.msra.mxu0 0.0
  %257 = vmatprep.subr.mxu0 0.0
  %258 = vmatpush2.xpose.msra.mxu0 0.0
  %259 = vmatprep.mubr.f32.mxu0 0.0
  %260 = vmatmul.mubr.f32.gmra.mxu0 %v191
  %v261 = vpop.f32.mrf.mxu0
  %v262 = vadd.f32 0.0, %v261
  %v263 = vpop.f32.mrf.mxu0
  %264 = vdwg.mxu0
  %266 = vrot.lane.b32.xlu0 %v181, 96
  %v267 = vpop.permute.xlu0 %266
  %v269 = vsel %vm189, %v185, 0
  %v271 = vsel %vm189, %v267, 0
  %273 = vmatprep.subr.mxu0 0.0
  %274 = vmatpush1.xpose.msra.mxu0 0.0
  %275 = vmatprep.subr.mxu0 0.0
  %276 = vmatpush1.xpose.msra.mxu0 0.0
  %277 = vmatprep.subr.mxu0 0.0
  %278 = vmatpush1.xpose.msra.mxu0 0.0
  %279 = vmatprep.subr.mxu0 0.0
  %280 = vmatpush1.xpose.msra.mxu0 0.0
  %281 = vmatprep.subr.mxu0 0.0
  %282 = vmatpush1.xpose.msra.mxu0 0.0
  %283 = vmatprep.subr.mxu0 0.0
  %284 = vmatpush1.xpose.msra.mxu0 0.0
  %285 = vmatprep.subr.mxu0 0.0
  %286 = vmatpush1.xpose.msra.mxu0 0.0
  %287 = vmatprep.subr.mxu0 0.0
  %288 = vmatpush1.xpose.msra.mxu0 0.0
  %289 = vmatprep.subr.mxu0 0.0
  %290 = vmatpush1.xpose.msra.mxu0 0.0
  %291 = vmatprep.subr.mxu0 0.0
  %292 = vmatpush1.xpose.msra.mxu0 0.0
  %293 = vmatprep.subr.mxu0 0.0
  %294 = vmatpush1.xpose.msra.mxu0 0.0
  %295 = vmatprep.subr.mxu0 0.0
  %296 = vmatpush1.xpose.msra.mxu0 0.0
  %297 = vmatprep.subr.mxu0 0.0
  %298 = vmatpush1.xpose.msra.mxu0 0.0
  %299 = vmatprep.subr.mxu0 0.0
  %300 = vmatpush1.xpose.msra.mxu0 0.0
  %301 = vmatprep.subr.mxu0 0.0
  %302 = vmatpush1.xpose.msra.mxu0 0.0
  %303 = vmatprep.subr.mxu0 0.0
  %304 = vmatpush1.xpose.msra.mxu0 %v271
  %305 = vmatprep.subr.mxu0 0.0
  %306 = vmatpush2.xpose.msra.mxu0 0.0
  %307 = vmatprep.subr.mxu0 0.0
  %308 = vmatpush2.xpose.msra.mxu0 0.0
  %309 = vmatprep.subr.mxu0 0.0
  %310 = vmatpush2.xpose.msra.mxu0 0.0
  %311 = vmatprep.subr.mxu0 0.0
  %312 = vmatpush2.xpose.msra.mxu0 0.0
  %313 = vmatprep.subr.mxu0 0.0
  %314 = vmatpush2.xpose.msra.mxu0 0.0
  %315 = vmatprep.subr.mxu0 0.0
  %316 = vmatpush2.xpose.msra.mxu0 0.0
  %317 = vmatprep.subr.mxu0 0.0
  %318 = vmatpush2.xpose.msra.mxu0 0.0
  %319 = vmatprep.subr.mxu0 0.0
  %320 = vmatpush2.xpose.msra.mxu0 0.0
  %321 = vmatprep.subr.mxu0 0.0
  %322 = vmatpush2.xpose.msra.mxu0 0.0
  %323 = vmatprep.subr.mxu0 0.0
  %324 = vmatpush2.xpose.msra.mxu0 0.0
  %325 = vmatprep.subr.mxu0 0.0
  %326 = vmatpush2.xpose.msra.mxu0 0.0
  %327 = vmatprep.subr.mxu0 0.0
  %328 = vmatpush2.xpose.msra.mxu0 0.0
  %329 = vmatprep.subr.mxu0 0.0
  %330 = vmatpush2.xpose.msra.mxu0 0.0
  %331 = vmatprep.subr.mxu0 0.0
  %332 = vmatpush2.xpose.msra.mxu0 0.0
  %333 = vmatprep.subr.mxu0 0.0
  %334 = vmatpush2.xpose.msra.mxu0 0.0
  %335 = vmatprep.subr.mxu0 0.0
  %336 = vmatpush2.xpose.msra.mxu0 0.0
  %337 = vmatprep.mubr.f32.mxu0 0.0
  %338 = vmatmul.mubr.f32.gmra.mxu0 %v269
  %v339 = vpop.f32.mrf.mxu0
  %v340 = vadd.f32 0.0, %v339
  %v341 = vpop.f32.mrf.mxu0
  %342 = vdwg.mxu0
  %v343 = vsel %vm189, %v262, -inf
  %344 = vmax.xlane.f32.xlu0 %v343
  %v345 = vpop.xlane.xlu0 %344
  %v346 = vsel %vm189, %v340, -inf
  %347 = vmax.xlane.f32.xlu0 %v346
  %v348 = vpop.xlane.xlu0 %347
  %v349 = vsub.f32 %v262, %v345
  %v350 = vsub.f32 %v340, %v348
  %v351 = vmul.f32 %v349, 1.442695
  %v352 = vpow.pop %v351
  %v353 = vmul.f32 %v350, 1.442695
  %v354 = vpow.pop %v353
  %v355 = vsel %vm189, %v352, 0.0
  %356 = vadd.xlane.f32.xlu0 %v355
  %v357 = vpop.xlane.xlu0 %356
  %v358 = vsel %vm189, %v354, 0.0
  %359 = vadd.xlane.f32.xlu0 %v358
  %v360 = vpop.xlane.xlu0 %359
  %v361 = vrcp.pop %v357
  %v362 = vrcp.pop %v360
  %v363 = vmul.f32 %v352, %v361
  %v364 = vmul.f32 %v354, %v362
  %365 = vrot.lane.b32.xlu0 %v176, 64
  %v366 = vpop.permute.xlu0 %365
  %v369 = vsel %vm189, %v363, 0
  %371 = vmatprep.subr.mxu0 0.0
  %372 = vmatpush1.msra.mxu0 0.0
  %373 = vmatprep.subr.mxu0 0.0
  %374 = vmatpush1.msra.mxu0 0.0
  %375 = vmatprep.subr.mxu0 0.0
  %376 = vmatpush1.msra.mxu0 0.0
  %377 = vmatprep.subr.mxu0 0.0
  %378 = vmatpush1.msra.mxu0 0.0
  %379 = vmatprep.subr.mxu0 0.0
  %380 = vmatpush1.msra.mxu0 0.0
  %381 = vmatprep.subr.mxu0 0.0
  %382 = vmatpush1.msra.mxu0 0.0
  %383 = vmatprep.subr.mxu0 0.0
  %384 = vmatpush1.msra.mxu0 0.0
  %385 = vmatprep.subr.mxu0 0.0
  %386 = vmatpush1.msra.mxu0 0.0
  %387 = vmatprep.subr.mxu0 0.0
  %388 = vmatpush1.msra.mxu0 0.0
  %389 = vmatprep.subr.mxu0 0.0
  %390 = vmatpush1.msra.mxu0 0.0
  %391 = vmatprep.subr.mxu0 0.0
  %392 = vmatpush1.msra.mxu0 0.0
  %393 = vmatprep.subr.mxu0 0.0
  %394 = vmatpush1.msra.mxu0 0.0
  %395 = vmatprep.subr.mxu0 0.0
  %396 = vmatpush1.msra.mxu0 0.0
  %397 = vmatprep.subr.mxu0 0.0
  %398 = vmatpush1.msra.mxu0 0.0
  %399 = vmatprep.subr.mxu0 0.0
  %400 = vmatpush1.msra.mxu0 0.0
  %401 = vmatprep.subr.mxu0 0.0
  %402 = vmatpush1.msra.mxu0 %v366
  %403 = vmatprep.subr.mxu0 0.0
  %404 = vmatpush2.msra.mxu0 0.0
  %405 = vmatprep.subr.mxu0 0.0
  %406 = vmatpush2.msra.mxu0 0.0
  %407 = vmatprep.subr.mxu0 0.0
  %408 = vmatpush2.msra.mxu0 0.0
  %409 = vmatprep.subr.mxu0 0.0
  %410 = vmatpush2.msra.mxu0 0.0
  %411 = vmatprep.subr.mxu0 0.0
  %412 = vmatpush2.msra.mxu0 0.0
  %413 = vmatprep.subr.mxu0 0.0
  %414 = vmatpush2.msra.mxu0 0.0
  %415 = vmatprep.subr.mxu0 0.0
  %416 = vmatpush2.msra.mxu0 0.0
  %417 = vmatprep.subr.mxu0 0.0
  %418 = vmatpush2.msra.mxu0 0.0
  %419 = vmatprep.subr.mxu0 0.0
  %420 = vmatpush2.msra.mxu0 0.0
  %421 = vmatprep.subr.mxu0 0.0
  %422 = vmatpush2.msra.mxu0 0.0
  %423 = vmatprep.subr.mxu0 0.0
  %424 = vmatpush2.msra.mxu0 0.0
  %425 = vmatprep.subr.mxu0 0.0
  %426 = vmatpush2.msra.mxu0 0.0
  %427 = vmatprep.subr.mxu0 0.0
  %428 = vmatpush2.msra.mxu0 0.0
  %429 = vmatprep.subr.mxu0 0.0
  %430 = vmatpush2.msra.mxu0 0.0
  %431 = vmatprep.subr.mxu0 0.0
  %432 = vmatpush2.msra.mxu0 0.0
  %433 = vmatprep.subr.mxu0 0.0
  %434 = vmatpush2.msra.mxu0 0.0
  %435 = vmatprep.mubr.f32.mxu0 0.0
  %436 = vmatmul.mubr.f32.gmra.mxu0 %v369
  %v437 = vpop.f32.mrf.mxu0
  %v438 = vadd.f32 0.0, %v437
  %v439 = vpop.f32.mrf.mxu0
  %440 = vdwg.mxu0
  %441 = vrot.lane.b32.xlu0 %v181, 64
  %v442 = vpop.permute.xlu0 %441
  %v445 = vsel %vm189, %v364, 0
  %447 = vmatprep.subr.mxu0 0.0
  %448 = vmatpush1.msra.mxu0 0.0
  %449 = vmatprep.subr.mxu0 0.0
  %450 = vmatpush1.msra.mxu0 0.0
  %451 = vmatprep.subr.mxu0 0.0
  %452 = vmatpush1.msra.mxu0 0.0
  %453 = vmatprep.subr.mxu0 0.0
  %454 = vmatpush1.msra.mxu0 0.0
  %455 = vmatprep.subr.mxu0 0.0
  %456 = vmatpush1.msra.mxu0 0.0
  %457 = vmatprep.subr.mxu0 0.0
  %458 = vmatpush1.msra.mxu0 0.0
  %459 = vmatprep.subr.mxu0 0.0
  %460 = vmatpush1.msra.mxu0 0.0
  %461 = vmatprep.subr.mxu0 0.0
  %462 = vmatpush1.msra.mxu0 0.0
  %463 = vmatprep.subr.mxu0 0.0
  %464 = vmatpush1.msra.mxu0 0.0
  %465 = vmatprep.subr.mxu0 0.0
  %466 = vmatpush1.msra.mxu0 0.0
  %467 = vmatprep.subr.mxu0 0.0
  %468 = vmatpush1.msra.mxu0 0.0
  %469 = vmatprep.subr.mxu0 0.0
  %470 = vmatpush1.msra.mxu0 0.0
  %471 = vmatprep.subr.mxu0 0.0
  %472 = vmatpush1.msra.mxu0 0.0
  %473 = vmatprep.subr.mxu0 0.0
  %474 = vmatpush1.msra.mxu0 0.0
  %475 = vmatprep.subr.mxu0 0.0
  %476 = vmatpush1.msra.mxu0 0.0
  %477 = vmatprep.subr.mxu0 0.0
  %478 = vmatpush1.msra.mxu0 %v442
  %479 = vmatprep.subr.mxu0 0.0
  %480 = vmatpush2.msra.mxu0 0.0
  %481 = vmatprep.subr.mxu0 0.0
  %482 = vmatpush2.msra.mxu0 0.0
  %483 = vmatprep.subr.mxu0 0.0
  %484 = vmatpush2.msra.mxu0 0.0
  %485 = vmatprep.subr.mxu0 0.0
  %486 = vmatpush2.msra.mxu0 0.0
  %487 = vmatprep.subr.mxu0 0.0
  %488 = vmatpush2.msra.mxu0 0.0
  %489 = vmatprep.subr.mxu0 0.0
  %490 = vmatpush2.msra.mxu0 0.0
  %491 = vmatprep.subr.mxu0 0.0
  %492 = vmatpush2.msra.mxu0 0.0
  %493 = vmatprep.subr.mxu0 0.0
  %494 = vmatpush2.msra.mxu0 0.0
  %495 = vmatprep.subr.mxu0 0.0
  %496 = vmatpush2.msra.mxu0 0.0
  %497 = vmatprep.subr.mxu0 0.0
  %498 = vmatpush2.msra.mxu0 0.0
  %499 = vmatprep.subr.mxu0 0.0
  %500 = vmatpush2.msra.mxu0 0.0
  %501 = vmatprep.subr.mxu0 0.0
  %502 = vmatpush2.msra.mxu0 0.0
  %503 = vmatprep.subr.mxu0 0.0
  %504 = vmatpush2.msra.mxu0 0.0
  %505 = vmatprep.subr.mxu0 0.0
  %506 = vmatpush2.msra.mxu0 0.0
  %507 = vmatprep.subr.mxu0 0.0
  %508 = vmatpush2.msra.mxu0 0.0
  %509 = vmatprep.subr.mxu0 0.0
  %510 = vmatpush2.msra.mxu0 0.0
  %511 = vmatprep.mubr.f32.mxu0 0.0
  %512 = vmatmul.mubr.f32.gmra.mxu0 %v445
  %v513 = vpop.f32.mrf.mxu0
  %v514 = vadd.f32 0.0, %v513
  %v515 = vpop.f32.mrf.mxu0
  %516 = vdwg.mxu0
  %517 = vrot.lane.b32.xlu0 %v184, 120
  %v518 = vpop.permute.xlu0 %517
  %519 = vrot.lane.b32.xlu0 %v176, 88
  %v520 = vpop.permute.xlu0 %519
  %v521 = vsel %vm189, %v518, 0
  %v523 = vsel %vm189, %v520, 0
  %525 = vmatprep.subr.mxu0 0.0
  %526 = vmatpush1.xpose.msra.mxu0 0.0
  %527 = vmatprep.subr.mxu0 0.0
  %528 = vmatpush1.xpose.msra.mxu0 0.0
  %529 = vmatprep.subr.mxu0 0.0
  %530 = vmatpush1.xpose.msra.mxu0 0.0
  %531 = vmatprep.subr.mxu0 0.0
  %532 = vmatpush1.xpose.msra.mxu0 0.0
  %533 = vmatprep.subr.mxu0 0.0
  %534 = vmatpush1.xpose.msra.mxu0 0.0
  %535 = vmatprep.subr.mxu0 0.0
  %536 = vmatpush1.xpose.msra.mxu0 0.0
  %537 = vmatprep.subr.mxu0 0.0
  %538 = vmatpush1.xpose.msra.mxu0 0.0
  %539 = vmatprep.subr.mxu0 0.0
  %540 = vmatpush1.xpose.msra.mxu0 0.0
  %541 = vmatprep.subr.mxu0 0.0
  %542 = vmatpush1.xpose.msra.mxu0 0.0
  %543 = vmatprep.subr.mxu0 0.0
  %544 = vmatpush1.xpose.msra.mxu0 0.0
  %545 = vmatprep.subr.mxu0 0.0
  %546 = vmatpush1.xpose.msra.mxu0 0.0
  %547 = vmatprep.subr.mxu0 0.0
  %548 = vmatpush1.xpose.msra.mxu0 0.0
  %549 = vmatprep.subr.mxu0 0.0
  %550 = vmatpush1.xpose.msra.mxu0 0.0
  %551 = vmatprep.subr.mxu0 0.0
  %552 = vmatpush1.xpose.msra.mxu0 0.0
  %553 = vmatprep.subr.mxu0 0.0
  %554 = vmatpush1.xpose.msra.mxu0 0.0
  %555 = vmatprep.subr.mxu0 0.0
  %556 = vmatpush1.xpose.msra.mxu0 %v523
  %557 = vmatprep.subr.mxu0 0.0
  %558 = vmatpush2.xpose.msra.mxu0 0.0
  %559 = vmatprep.subr.mxu0 0.0
  %560 = vmatpush2.xpose.msra.mxu0 0.0
  %561 = vmatprep.subr.mxu0 0.0
  %562 = vmatpush2.xpose.msra.mxu0 0.0
  %563 = vmatprep.subr.mxu0 0.0
  %564 = vmatpush2.xpose.msra.mxu0 0.0
  %565 = vmatprep.subr.mxu0 0.0
  %566 = vmatpush2.xpose.msra.mxu0 0.0
  %567 = vmatprep.subr.mxu0 0.0
  %568 = vmatpush2.xpose.msra.mxu0 0.0
  %569 = vmatprep.subr.mxu0 0.0
  %570 = vmatpush2.xpose.msra.mxu0 0.0
  %571 = vmatprep.subr.mxu0 0.0
  %572 = vmatpush2.xpose.msra.mxu0 0.0
  %573 = vmatprep.subr.mxu0 0.0
  %574 = vmatpush2.xpose.msra.mxu0 0.0
  %575 = vmatprep.subr.mxu0 0.0
  %576 = vmatpush2.xpose.msra.mxu0 0.0
  %577 = vmatprep.subr.mxu0 0.0
  %578 = vmatpush2.xpose.msra.mxu0 0.0
  %579 = vmatprep.subr.mxu0 0.0
  %580 = vmatpush2.xpose.msra.mxu0 0.0
  %581 = vmatprep.subr.mxu0 0.0
  %582 = vmatpush2.xpose.msra.mxu0 0.0
  %583 = vmatprep.subr.mxu0 0.0
  %584 = vmatpush2.xpose.msra.mxu0 0.0
  %585 = vmatprep.subr.mxu0 0.0
  %586 = vmatpush2.xpose.msra.mxu0 0.0
  %587 = vmatprep.subr.mxu0 0.0
  %588 = vmatpush2.xpose.msra.mxu0 0.0
  %589 = vmatprep.mubr.f32.mxu0 0.0
  %590 = vmatmul.mubr.f32.gmra.mxu0 %v521
  %v591 = vpop.f32.mrf.mxu0
  %v592 = vadd.f32 0.0, %v591
  %v593 = vpop.f32.mrf.mxu0
  %594 = vdwg.mxu0
  %595 = vrot.lane.b32.xlu0 %v185, 120
  %v596 = vpop.permute.xlu0 %595
  %597 = vrot.lane.b32.xlu0 %v181, 88
  %v598 = vpop.permute.xlu0 %597
  %v599 = vsel %vm189, %v596, 0
  %v601 = vsel %vm189, %v598, 0
  %603 = vmatprep.subr.mxu0 0.0
  %604 = vmatpush1.xpose.msra.mxu0 0.0
  %605 = vmatprep.subr.mxu0 0.0
  %606 = vmatpush1.xpose.msra.mxu0 0.0
  %607 = vmatprep.subr.mxu0 0.0
  %608 = vmatpush1.xpose.msra.mxu0 0.0
  %609 = vmatprep.subr.mxu0 0.0
  %610 = vmatpush1.xpose.msra.mxu0 0.0
  %611 = vmatprep.subr.mxu0 0.0
  %612 = vmatpush1.xpose.msra.mxu0 0.0
  %613 = vmatprep.subr.mxu0 0.0
  %614 = vmatpush1.xpose.msra.mxu0 0.0
  %615 = vmatprep.subr.mxu0 0.0
  %616 = vmatpush1.xpose.msra.mxu0 0.0
  %617 = vmatprep.subr.mxu0 0.0
  %618 = vmatpush1.xpose.msra.mxu0 0.0
  %619 = vmatprep.subr.mxu0 0.0
  %620 = vmatpush1.xpose.msra.mxu0 0.0
  %621 = vmatprep.subr.mxu0 0.0
  %622 = vmatpush1.xpose.msra.mxu0 0.0
  %623 = vmatprep.subr.mxu0 0.0
  %624 = vmatpush1.xpose.msra.mxu0 0.0
  %625 = vmatprep.subr.mxu0 0.0
  %626 = vmatpush1.xpose.msra.mxu0 0.0
  %627 = vmatprep.subr.mxu0 0.0
  %628 = vmatpush1.xpose.msra.mxu0 0.0
  %629 = vmatprep.subr.mxu0 0.0
  %630 = vmatpush1.xpose.msra.mxu0 0.0
  %631 = vmatprep.subr.mxu0 0.0
  %632 = vmatpush1.xpose.msra.mxu0 0.0
  %633 = vmatprep.subr.mxu0 0.0
  %634 = vmatpush1.xpose.msra.mxu0 %v601
  %635 = vmatprep.subr.mxu0 0.0
  %636 = vmatpush2.xpose.msra.mxu0 0.0
  %637 = vmatprep.subr.mxu0 0.0
  %638 = vmatpush2.xpose.msra.mxu0 0.0
  %639 = vmatprep.subr.mxu0 0.0
  %640 = vmatpush2.xpose.msra.mxu0 0.0
  %641 = vmatprep.subr.mxu0 0.0
  %642 = vmatpush2.xpose.msra.mxu0 0.0
  %643 = vmatprep.subr.mxu0 0.0
  %644 = vmatpush2.xpose.msra.mxu0 0.0
  %645 = vmatprep.subr.mxu0 0.0
  %646 = vmatpush2.xpose.msra.mxu0 0.0
  %647 = vmatprep.subr.mxu0 0.0
  %648 = vmatpush2.xpose.msra.mxu0 0.0
  %649 = vmatprep.subr.mxu0 0.0
  %650 = vmatpush2.xpose.msra.mxu0 0.0
  %651 = vmatprep.subr.mxu0 0.0
  %652 = vmatpush2.xpose.msra.mxu0 0.0
  %653 = vmatprep.subr.mxu0 0.0
  %654 = vmatpush2.xpose.msra.mxu0 0.0
  %655 = vmatprep.subr.mxu0 0.0
  %656 = vmatpush2.xpose.msra.mxu0 0.0
  %657 = vmatprep.subr.mxu0 0.0
  %658 = vmatpush2.xpose.msra.mxu0 0.0
  %659 = vmatprep.subr.mxu0 0.0
  %660 = vmatpush2.xpose.msra.mxu0 0.0
  %661 = vmatprep.subr.mxu0 0.0
  %662 = vmatpush2.xpose.msra.mxu0 0.0
  %663 = vmatprep.subr.mxu0 0.0
  %664 = vmatpush2.xpose.msra.mxu0 0.0
  %665 = vmatprep.subr.mxu0 0.0
  %666 = vmatpush2.xpose.msra.mxu0 0.0
  %667 = vmatprep.mubr.f32.mxu0 0.0
  %668 = vmatmul.mubr.f32.gmra.mxu0 %v599
  %v669 = vpop.f32.mrf.mxu0
  %v670 = vadd.f32 0.0, %v669
  %v671 = vpop.f32.mrf.mxu0
  %672 = vdwg.mxu0
  %v673 = vsel %vm189, %v592, -inf
  %674 = vmax.xlane.f32.xlu0 %v673
  %v675 = vpop.xlane.xlu0 %674
  %v676 = vsel %vm189, %v670, -inf
  %677 = vmax.xlane.f32.xlu0 %v676
  %v678 = vpop.xlane.xlu0 %677
  %v679 = vsub.f32 %v592, %v675
  %v680 = vsub.f32 %v670, %v678
  %v681 = vmul.f32 %v679, 1.442695
  %v682 = vpow.pop %v681
  %v683 = vmul.f32 %v680, 1.442695
  %v684 = vpow.pop %v683
  %v685 = vsel %vm189, %v682, 0.0
  %686 = vadd.xlane.f32.xlu0 %v685
  %v687 = vpop.xlane.xlu0 %686
  %v688 = vsel %vm189, %v684, 0.0
  %689 = vadd.xlane.f32.xlu0 %v688
  %v690 = vpop.xlane.xlu0 %689
  %v691 = vrcp.pop %v687
  %v692 = vrcp.pop %v690
  %v693 = vmul.f32 %v682, %v691
  %v694 = vmul.f32 %v684, %v692
  %695 = vrot.lane.b32.xlu0 %v176, 56
  %v696 = vpop.permute.xlu0 %695
  %v699 = vsel %vm189, %v693, 0
  %701 = vmatprep.subr.mxu0 0.0
  %702 = vmatpush1.msra.mxu0 0.0
  %703 = vmatprep.subr.mxu0 0.0
  %704 = vmatpush1.msra.mxu0 0.0
  %705 = vmatprep.subr.mxu0 0.0
  %706 = vmatpush1.msra.mxu0 0.0
  %707 = vmatprep.subr.mxu0 0.0
  %708 = vmatpush1.msra.mxu0 0.0
  %709 = vmatprep.subr.mxu0 0.0
  %710 = vmatpush1.msra.mxu0 0.0
  %711 = vmatprep.subr.mxu0 0.0
  %712 = vmatpush1.msra.mxu0 0.0
  %713 = vmatprep.subr.mxu0 0.0
  %714 = vmatpush1.msra.mxu0 0.0
  %715 = vmatprep.subr.mxu0 0.0
  %716 = vmatpush1.msra.mxu0 0.0
  %717 = vmatprep.subr.mxu0 0.0
  %718 = vmatpush1.msra.mxu0 0.0
  %719 = vmatprep.subr.mxu0 0.0
  %720 = vmatpush1.msra.mxu0 0.0
  %721 = vmatprep.subr.mxu0 0.0
  %722 = vmatpush1.msra.mxu0 0.0
  %723 = vmatprep.subr.mxu0 0.0
  %724 = vmatpush1.msra.mxu0 0.0
  %725 = vmatprep.subr.mxu0 0.0
  %726 = vmatpush1.msra.mxu0 0.0
  %727 = vmatprep.subr.mxu0 0.0
  %728 = vmatpush1.msra.mxu0 0.0
  %729 = vmatprep.subr.mxu0 0.0
  %730 = vmatpush1.msra.mxu0 0.0
  %731 = vmatprep.subr.mxu0 0.0
  %732 = vmatpush1.msra.mxu0 %v696
  %733 = vmatprep.subr.mxu0 0.0
  %734 = vmatpush2.msra.mxu0 0.0
  %735 = vmatprep.subr.mxu0 0.0
  %736 = vmatpush2.msra.mxu0 0.0
  %737 = vmatprep.subr.mxu0 0.0
  %738 = vmatpush2.msra.mxu0 0.0
  %739 = vmatprep.subr.mxu0 0.0
  %740 = vmatpush2.msra.mxu0 0.0
  %741 = vmatprep.subr.mxu0 0.0
  %742 = vmatpush2.msra.mxu0 0.0
  %743 = vmatprep.subr.mxu0 0.0
  %744 = vmatpush2.msra.mxu0 0.0
  %745 = vmatprep.subr.mxu0 0.0
  %746 = vmatpush2.msra.mxu0 0.0
  %747 = vmatprep.subr.mxu0 0.0
  %748 = vmatpush2.msra.mxu0 0.0
  %749 = vmatprep.subr.mxu0 0.0
  %750 = vmatpush2.msra.mxu0 0.0
  %751 = vmatprep.subr.mxu0 0.0
  %752 = vmatpush2.msra.mxu0 0.0
  %753 = vmatprep.subr.mxu0 0.0
  %754 = vmatpush2.msra.mxu0 0.0
  %755 = vmatprep.subr.mxu0 0.0
  %756 = vmatpush2.msra.mxu0 0.0
  %757 = vmatprep.subr.mxu0 0.0
  %758 = vmatpush2.msra.mxu0 0.0
  %759 = vmatprep.subr.mxu0 0.0
  %760 = vmatpush2.msra.mxu0 0.0
  %761 = vmatprep.subr.mxu0 0.0
  %762 = vmatpush2.msra.mxu0 0.0
  %763 = vmatprep.subr.mxu0 0.0
  %764 = vmatpush2.msra.mxu0 0.0
  %765 = vmatprep.mubr.f32.mxu0 0.0
  %766 = vmatmul.mubr.f32.gmra.mxu0 %v699
  %v767 = vpop.f32.mrf.mxu0
  %v768 = vadd.f32 0.0, %v767
  %v769 = vpop.f32.mrf.mxu0
  %770 = vdwg.mxu0
  %771 = vrot.lane.b32.xlu0 %v181, 56
  %v772 = vpop.permute.xlu0 %771
  %v775 = vsel %vm189, %v694, 0
  %777 = vmatprep.subr.mxu0 0.0
  %778 = vmatpush1.msra.mxu0 0.0
  %779 = vmatprep.subr.mxu0 0.0
  %780 = vmatpush1.msra.mxu0 0.0
  %781 = vmatprep.subr.mxu0 0.0
  %782 = vmatpush1.msra.mxu0 0.0
  %783 = vmatprep.subr.mxu0 0.0
  %784 = vmatpush1.msra.mxu0 0.0
  %785 = vmatprep.subr.mxu0 0.0
  %786 = vmatpush1.msra.mxu0 0.0
  %787 = vmatprep.subr.mxu0 0.0
  %788 = vmatpush1.msra.mxu0 0.0
  %789 = vmatprep.subr.mxu0 0.0
  %790 = vmatpush1.msra.mxu0 0.0
  %791 = vmatprep.subr.mxu0 0.0
  %792 = vmatpush1.msra.mxu0 0.0
  %793 = vmatprep.subr.mxu0 0.0
  %794 = vmatpush1.msra.mxu0 0.0
  %795 = vmatprep.subr.mxu0 0.0
  %796 = vmatpush1.msra.mxu0 0.0
  %797 = vmatprep.subr.mxu0 0.0
  %798 = vmatpush1.msra.mxu0 0.0
  %799 = vmatprep.subr.mxu0 0.0
  %800 = vmatpush1.msra.mxu0 0.0
  %801 = vmatprep.subr.mxu0 0.0
  %802 = vmatpush1.msra.mxu0 0.0
  %803 = vmatprep.subr.mxu0 0.0
  %804 = vmatpush1.msra.mxu0 0.0
  %805 = vmatprep.subr.mxu0 0.0
  %806 = vmatpush1.msra.mxu0 0.0
  %807 = vmatprep.subr.mxu0 0.0
  %808 = vmatpush1.msra.mxu0 %v772
  %809 = vmatprep.subr.mxu0 0.0
  %810 = vmatpush2.msra.mxu0 0.0
  %811 = vmatprep.subr.mxu0 0.0
  %812 = vmatpush2.msra.mxu0 0.0
  %813 = vmatprep.subr.mxu0 0.0
  %814 = vmatpush2.msra.mxu0 0.0
  %815 = vmatprep.subr.mxu0 0.0
  %816 = vmatpush2.msra.mxu0 0.0
  %817 = vmatprep.subr.mxu0 0.0
  %818 = vmatpush2.msra.mxu0 0.0
  %819 = vmatprep.subr.mxu0 0.0
  %820 = vmatpush2.msra.mxu0 0.0
  %821 = vmatprep.subr.mxu0 0.0
  %822 = vmatpush2.msra.mxu0 0.0
  %823 = vmatprep.subr.mxu0 0.0
  %824 = vmatpush2.msra.mxu0 0.0
  %825 = vmatprep.subr.mxu0 0.0
  %826 = vmatpush2.msra.mxu0 0.0
  %827 = vmatprep.subr.mxu0 0.0
  %828 = vmatpush2.msra.mxu0 0.0
  %829 = vmatprep.subr.mxu0 0.0
  %830 = vmatpush2.msra.mxu0 0.0
  %831 = vmatprep.subr.mxu0 0.0
  %832 = vmatpush2.msra.mxu0 0.0
  %833 = vmatprep.subr.mxu0 0.0
  %834 = vmatpush2.msra.mxu0 0.0
  %835 = vmatprep.subr.mxu0 0.0
  %836 = vmatpush2.msra.mxu0 0.0
  %837 = vmatprep.subr.mxu0 0.0
  %838 = vmatpush2.msra.mxu0 0.0
  %839 = vmatprep.subr.mxu0 0.0
  %840 = vmatpush2.msra.mxu0 0.0
  %841 = vmatprep.mubr.f32.mxu0 0.0
  %842 = vmatmul.mubr.f32.gmra.mxu0 %v775
  %v843 = vpop.f32.mrf.mxu0
  %v844 = vadd.f32 0.0, %v843
  %v845 = vpop.f32.mrf.mxu0
  %846 = vdwg.mxu0
  %847 = vrot.lane.b32.xlu0 %v184, 112
  %v848 = vpop.permute.xlu0 %847
  %849 = vrot.lane.b32.xlu0 %v176, 80
  %v850 = vpop.permute.xlu0 %849
  %v851 = vsel %vm189, %v848, 0
  %v853 = vsel %vm189, %v850, 0
  %855 = vmatprep.subr.mxu0 0.0
  %856 = vmatpush1.xpose.msra.mxu0 0.0
  %857 = vmatprep.subr.mxu0 0.0
  %858 = vmatpush1.xpose.msra.mxu0 0.0
  %859 = vmatprep.subr.mxu0 0.0
  %860 = vmatpush1.xpose.msra.mxu0 0.0
  %861 = vmatprep.subr.mxu0 0.0
  %862 = vmatpush1.xpose.msra.mxu0 0.0
  %863 = vmatprep.subr.mxu0 0.0
  %864 = vmatpush1.xpose.msra.mxu0 0.0
  %865 = vmatprep.subr.mxu0 0.0
  %866 = vmatpush1.xpose.msra.mxu0 0.0
  %867 = vmatprep.subr.mxu0 0.0
  %868 = vmatpush1.xpose.msra.mxu0 0.0
  %869 = vmatprep.subr.mxu0 0.0
  %870 = vmatpush1.xpose.msra.mxu0 0.0
  %871 = vmatprep.subr.mxu0 0.0
  %872 = vmatpush1.xpose.msra.mxu0 0.0
  %873 = vmatprep.subr.mxu0 0.0
  %874 = vmatpush1.xpose.msra.mxu0 0.0
  %875 = vmatprep.subr.mxu0 0.0
  %876 = vmatpush1.xpose.msra.mxu0 0.0
  %877 = vmatprep.subr.mxu0 0.0
  %878 = vmatpush1.xpose.msra.mxu0 0.0
  %879 = vmatprep.subr.mxu0 0.0
  %880 = vmatpush1.xpose.msra.mxu0 0.0
  %881 = vmatprep.subr.mxu0 0.0
  %882 = vmatpush1.xpose.msra.mxu0 0.0
  %883 = vmatprep.subr.mxu0 0.0
  %884 = vmatpush1.xpose.msra.mxu0 0.0
  %885 = vmatprep.subr.mxu0 0.0
  %886 = vmatpush1.xpose.msra.mxu0 %v853
  %887 = vmatprep.subr.mxu0 0.0
  %888 = vmatpush2.xpose.msra.mxu0 0.0
  %889 = vmatprep.subr.mxu0 0.0
  %890 = vmatpush2.xpose.msra.mxu0 0.0
  %891 = vmatprep.subr.mxu0 0.0
  %892 = vmatpush2.xpose.msra.mxu0 0.0
  %893 = vmatprep.subr.mxu0 0.0
  %894 = vmatpush2.xpose.msra.mxu0 0.0
  %895 = vmatprep.subr.mxu0 0.0
  %896 = vmatpush2.xpose.msra.mxu0 0.0
  %897 = vmatprep.subr.mxu0 0.0
  %898 = vmatpush2.xpose.msra.mxu0 0.0
  %899 = vmatprep.subr.mxu0 0.0
  %900 = vmatpush2.xpose.msra.mxu0 0.0
  %901 = vmatprep.subr.mxu0 0.0
  %902 = vmatpush2.xpose.msra.mxu0 0.0
  %903 = vmatprep.subr.mxu0 0.0
  %904 = vmatpush2.xpose.msra.mxu0 0.0
  %905 = vmatprep.subr.mxu0 0.0
  %906 = vmatpush2.xpose.msra.mxu0 0.0
  %907 = vmatprep.subr.mxu0 0.0
  %908 = vmatpush2.xpose.msra.mxu0 0.0
  %909 = vmatprep.subr.mxu0 0.0
  %910 = vmatpush2.xpose.msra.mxu0 0.0
  %911 = vmatprep.subr.mxu0 0.0
  %912 = vmatpush2.xpose.msra.mxu0 0.0
  %913 = vmatprep.subr.mxu0 0.0
  %914 = vmatpush2.xpose.msra.mxu0 0.0
  %915 = vmatprep.subr.mxu0 0.0
  %916 = vmatpush2.xpose.msra.mxu0 0.0
  %917 = vmatprep.subr.mxu0 0.0
  %918 = vmatpush2.xpose.msra.mxu0 0.0
  %919 = vmatprep.mubr.f32.mxu0 0.0
  %920 = vmatmul.mubr.f32.gmra.mxu0 %v851
  %v921 = vpop.f32.mrf.mxu0
  %v922 = vadd.f32 0.0, %v921
  %v923 = vpop.f32.mrf.mxu0
  %924 = vdwg.mxu0
  %925 = vrot.lane.b32.xlu0 %v185, 112
  %v926 = vpop.permute.xlu0 %925
  %927 = vrot.lane.b32.xlu0 %v181, 80
  %v928 = vpop.permute.xlu0 %927
  %v929 = vsel %vm189, %v926, 0
  %v931 = vsel %vm189, %v928, 0
  %933 = vmatprep.subr.mxu0 0.0
  %934 = vmatpush1.xpose.msra.mxu0 0.0
  %935 = vmatprep.subr.mxu0 0.0
  %936 = vmatpush1.xpose.msra.mxu0 0.0
  %937 = vmatprep.subr.mxu0 0.0
  %938 = vmatpush1.xpose.msra.mxu0 0.0
  %939 = vmatprep.subr.mxu0 0.0
  %940 = vmatpush1.xpose.msra.mxu0 0.0
  %941 = vmatprep.subr.mxu0 0.0
  %942 = vmatpush1.xpose.msra.mxu0 0.0
  %943 = vmatprep.subr.mxu0 0.0
  %944 = vmatpush1.xpose.msra.mxu0 0.0
  %945 = vmatprep.subr.mxu0 0.0
  %946 = vmatpush1.xpose.msra.mxu0 0.0
  %947 = vmatprep.subr.mxu0 0.0
  %948 = vmatpush1.xpose.msra.mxu0 0.0
  %949 = vmatprep.subr.mxu0 0.0
  %950 = vmatpush1.xpose.msra.mxu0 0.0
  %951 = vmatprep.subr.mxu0 0.0
  %952 = vmatpush1.xpose.msra.mxu0 0.0
  %953 = vmatprep.subr.mxu0 0.0
  %954 = vmatpush1.xpose.msra.mxu0 0.0
  %955 = vmatprep.subr.mxu0 0.0
  %956 = vmatpush1.xpose.msra.mxu0 0.0
  %957 = vmatprep.subr.mxu0 0.0
  %958 = vmatpush1.xpose.msra.mxu0 0.0
  %959 = vmatprep.subr.mxu0 0.0
  %960 = vmatpush1.xpose.msra.mxu0 0.0
  %961 = vmatprep.subr.mxu0 0.0
  %962 = vmatpush1.xpose.msra.mxu0 0.0
  %963 = vmatprep.subr.mxu0 0.0
  %964 = vmatpush1.xpose.msra.mxu0 %v931
  %965 = vmatprep.subr.mxu0 0.0
  %966 = vmatpush2.xpose.msra.mxu0 0.0
  %967 = vmatprep.subr.mxu0 0.0
  %968 = vmatpush2.xpose.msra.mxu0 0.0
  %969 = vmatprep.subr.mxu0 0.0
  %970 = vmatpush2.xpose.msra.mxu0 0.0
  %971 = vmatprep.subr.mxu0 0.0
  %972 = vmatpush2.xpose.msra.mxu0 0.0
  %973 = vmatprep.subr.mxu0 0.0
  %974 = vmatpush2.xpose.msra.mxu0 0.0
  %975 = vmatprep.subr.mxu0 0.0
  %976 = vmatpush2.xpose.msra.mxu0 0.0
  %977 = vmatprep.subr.mxu0 0.0
  %978 = vmatpush2.xpose.msra.mxu0 0.0
  %979 = vmatprep.subr.mxu0 0.0
  %980 = vmatpush2.xpose.msra.mxu0 0.0
  %981 = vmatprep.subr.mxu0 0.0
  %982 = vmatpush2.xpose.msra.mxu0 0.0
  %983 = vmatprep.subr.mxu0 0.0
  %984 = vmatpush2.xpose.msra.mxu0 0.0
  %985 = vmatprep.subr.mxu0 0.0
  %986 = vmatpush2.xpose.msra.mxu0 0.0
  %987 = vmatprep.subr.mxu0 0.0
  %988 = vmatpush2.xpose.msra.mxu0 0.0
  %989 = vmatprep.subr.mxu0 0.0
  %990 = vmatpush2.xpose.msra.mxu0 0.0
  %991 = vmatprep.subr.mxu0 0.0
  %992 = vmatpush2.xpose.msra.mxu0 0.0
  %993 = vmatprep.subr.mxu0 0.0
  %994 = vmatpush2.xpose.msra.mxu0 0.0
  %995 = vmatprep.subr.mxu0 0.0
  %996 = vmatpush2.xpose.msra.mxu0 0.0
  %997 = vmatprep.mubr.f32.mxu0 0.0
  %998 = vmatmul.mubr.f32.gmra.mxu0 %v929
  %v999 = vpop.f32.mrf.mxu0
  %v1000 = vadd.f32 0.0, %v999
  %v1001 = vpop.f32.mrf.mxu0
  %1002 = vdwg.mxu0
  %v1003 = vsel %vm189, %v922, -inf
  %1004 = vmax.xlane.f32.xlu0 %v1003
  %v1005 = vpop.xlane.xlu0 %1004
  %v1006 = vsel %vm189, %v1000, -inf
  %1007 = vmax.xlane.f32.xlu0 %v1006
  %v1008 = vpop.xlane.xlu0 %1007
  %v1009 = vsub.f32 %v922, %v1005
  %v1010 = vsub.f32 %v1000, %v1008
  %v1011 = vmul.f32 %v1009, 1.442695
  %v1012 = vpow.pop %v1011
  %v1013 = vmul.f32 %v1010, 1.442695
  %v1014 = vpow.pop %v1013
  %v1015 = vsel %vm189, %v1012, 0.0
  %1016 = vadd.xlane.f32.xlu0 %v1015
  %v1017 = vpop.xlane.xlu0 %1016
  %v1018 = vsel %vm189, %v1014, 0.0
  %1019 = vadd.xlane.f32.xlu0 %v1018
  %v1020 = vpop.xlane.xlu0 %1019
  %v1021 = vrcp.pop %v1017
  %v1022 = vrcp.pop %v1020
  %v1023 = vmul.f32 %v1012, %v1021
  %v1024 = vmul.f32 %v1014, %v1022
  %1025 = vrot.lane.b32.xlu0 %v176, 48
  %v1026 = vpop.permute.xlu0 %1025
  %v1029 = vsel %vm189, %v1023, 0
  %1031 = vmatprep.subr.mxu0 0.0
  %1032 = vmatpush1.msra.mxu0 0.0
  %1033 = vmatprep.subr.mxu0 0.0
  %1034 = vmatpush1.msra.mxu0 0.0
  %1035 = vmatprep.subr.mxu0 0.0
  %1036 = vmatpush1.msra.mxu0 0.0
  %1037 = vmatprep.subr.mxu0 0.0
  %1038 = vmatpush1.msra.mxu0 0.0
  %1039 = vmatprep.subr.mxu0 0.0
  %1040 = vmatpush1.msra.mxu0 0.0
  %1041 = vmatprep.subr.mxu0 0.0
  %1042 = vmatpush1.msra.mxu0 0.0
  %1043 = vmatprep.subr.mxu0 0.0
  %1044 = vmatpush1.msra.mxu0 0.0
  %1045 = vmatprep.subr.mxu0 0.0
  %1046 = vmatpush1.msra.mxu0 0.0
  %1047 = vmatprep.subr.mxu0 0.0
  %1048 = vmatpush1.msra.mxu0 0.0
  %1049 = vmatprep.subr.mxu0 0.0
  %1050 = vmatpush1.msra.mxu0 0.0
  %1051 = vmatprep.subr.mxu0 0.0
  %1052 = vmatpush1.msra.mxu0 0.0
  %1053 = vmatprep.subr.mxu0 0.0
  %1054 = vmatpush1.msra.mxu0 0.0
  %1055 = vmatprep.subr.mxu0 0.0
  %1056 = vmatpush1.msra.mxu0 0.0
  %1057 = vmatprep.subr.mxu0 0.0
  %1058 = vmatpush1.msra.mxu0 0.0
  %1059 = vmatprep.subr.mxu0 0.0
  %1060 = vmatpush1.msra.mxu0 0.0
  %1061 = vmatprep.subr.mxu0 0.0
  %1062 = vmatpush1.msra.mxu0 %v1026
  %1063 = vmatprep.subr.mxu0 0.0
  %1064 = vmatpush2.msra.mxu0 0.0
  %1065 = vmatprep.subr.mxu0 0.0
  %1066 = vmatpush2.msra.mxu0 0.0
  %1067 = vmatprep.subr.mxu0 0.0
  %1068 = vmatpush2.msra.mxu0 0.0
  %1069 = vmatprep.subr.mxu0 0.0
  %1070 = vmatpush2.msra.mxu0 0.0
  %1071 = vmatprep.subr.mxu0 0.0
  %1072 = vmatpush2.msra.mxu0 0.0
  %1073 = vmatprep.subr.mxu0 0.0
  %1074 = vmatpush2.msra.mxu0 0.0
  %1075 = vmatprep.subr.mxu0 0.0
  %1076 = vmatpush2.msra.mxu0 0.0
  %1077 = vmatprep.subr.mxu0 0.0
  %1078 = vmatpush2.msra.mxu0 0.0
  %1079 = vmatprep.subr.mxu0 0.0
  %1080 = vmatpush2.msra.mxu0 0.0
  %1081 = vmatprep.subr.mxu0 0.0
  %1082 = vmatpush2.msra.mxu0 0.0
  %1083 = vmatprep.subr.mxu0 0.0
  %1084 = vmatpush2.msra.mxu0 0.0
  %1085 = vmatprep.subr.mxu0 0.0
  %1086 = vmatpush2.msra.mxu0 0.0
  %1087 = vmatprep.subr.mxu0 0.0
  %1088 = vmatpush2.msra.mxu0 0.0
  %1089 = vmatprep.subr.mxu0 0.0
  %1090 = vmatpush2.msra.mxu0 0.0
  %1091 = vmatprep.subr.mxu0 0.0
  %1092 = vmatpush2.msra.mxu0 0.0
  %1093 = vmatprep.subr.mxu0 0.0
  %1094 = vmatpush2.msra.mxu0 0.0
  %1095 = vmatprep.mubr.f32.mxu0 0.0
  %1096 = vmatmul.mubr.f32.gmra.mxu0 %v1029
  %v1097 = vpop.f32.mrf.mxu0
  %v1098 = vadd.f32 0.0, %v1097
  %v1099 = vpop.f32.mrf.mxu0
  %1100 = vdwg.mxu0
  %1101 = vrot.lane.b32.xlu0 %v181, 48
  %v1102 = vpop.permute.xlu0 %1101
  %v1105 = vsel %vm189, %v1024, 0
  %1107 = vmatprep.subr.mxu0 0.0
  %1108 = vmatpush1.msra.mxu0 0.0
  %1109 = vmatprep.subr.mxu0 0.0
  %1110 = vmatpush1.msra.mxu0 0.0
  %1111 = vmatprep.subr.mxu0 0.0
  %1112 = vmatpush1.msra.mxu0 0.0
  %1113 = vmatprep.subr.mxu0 0.0
  %1114 = vmatpush1.msra.mxu0 0.0
  %1115 = vmatprep.subr.mxu0 0.0
  %1116 = vmatpush1.msra.mxu0 0.0
  %1117 = vmatprep.subr.mxu0 0.0
  %1118 = vmatpush1.msra.mxu0 0.0
  %1119 = vmatprep.subr.mxu0 0.0
  %1120 = vmatpush1.msra.mxu0 0.0
  %1121 = vmatprep.subr.mxu0 0.0
  %1122 = vmatpush1.msra.mxu0 0.0
  %1123 = vmatprep.subr.mxu0 0.0
  %1124 = vmatpush1.msra.mxu0 0.0
  %1125 = vmatprep.subr.mxu0 0.0
  %1126 = vmatpush1.msra.mxu0 0.0
  %1127 = vmatprep.subr.mxu0 0.0
  %1128 = vmatpush1.msra.mxu0 0.0
  %1129 = vmatprep.subr.mxu0 0.0
  %1130 = vmatpush1.msra.mxu0 0.0
  %1131 = vmatprep.subr.mxu0 0.0
  %1132 = vmatpush1.msra.mxu0 0.0
  %1133 = vmatprep.subr.mxu0 0.0
  %1134 = vmatpush1.msra.mxu0 0.0
  %1135 = vmatprep.subr.mxu0 0.0
  %1136 = vmatpush1.msra.mxu0 0.0
  %1137 = vmatprep.subr.mxu0 0.0
  %1138 = vmatpush1.msra.mxu0 %v1102
  %1139 = vmatprep.subr.mxu0 0.0
  %1140 = vmatpush2.msra.mxu0 0.0
  %1141 = vmatprep.subr.mxu0 0.0
  %1142 = vmatpush2.msra.mxu0 0.0
  %1143 = vmatprep.subr.mxu0 0.0
  %1144 = vmatpush2.msra.mxu0 0.0
  %1145 = vmatprep.subr.mxu0 0.0
  %1146 = vmatpush2.msra.mxu0 0.0
  %1147 = vmatprep.subr.mxu0 0.0
  %1148 = vmatpush2.msra.mxu0 0.0
  %1149 = vmatprep.subr.mxu0 0.0
  %1150 = vmatpush2.msra.mxu0 0.0
  %1151 = vmatprep.subr.mxu0 0.0
  %1152 = vmatpush2.msra.mxu0 0.0
  %1153 = vmatprep.subr.mxu0 0.0
  %1154 = vmatpush2.msra.mxu0 0.0
  %1155 = vmatprep.subr.mxu0 0.0
  %1156 = vmatpush2.msra.mxu0 0.0
  %1157 = vmatprep.subr.mxu0 0.0
  %1158 = vmatpush2.msra.mxu0 0.0
  %1159 = vmatprep.subr.mxu0 0.0
  %1160 = vmatpush2.msra.mxu0 0.0
  %1161 = vmatprep.subr.mxu0 0.0
  %1162 = vmatpush2.msra.mxu0 0.0
  %1163 = vmatprep.subr.mxu0 0.0
  %1164 = vmatpush2.msra.mxu0 0.0
  %1165 = vmatprep.subr.mxu0 0.0
  %1166 = vmatpush2.msra.mxu0 0.0
  %1167 = vmatprep.subr.mxu0 0.0
  %1168 = vmatpush2.msra.mxu0 0.0
  %1169 = vmatprep.subr.mxu0 0.0
  %1170 = vmatpush2.msra.mxu0 0.0
  %1171 = vmatprep.mubr.f32.mxu0 0.0
  %1172 = vmatmul.mubr.f32.gmra.mxu0 %v1105
  %v1173 = vpop.f32.mrf.mxu0
  %v1174 = vadd.f32 0.0, %v1173
  %v1175 = vpop.f32.mrf.mxu0
  %1176 = vdwg.mxu0
  %1177 = vrot.lane.b32.xlu0 %v184, 104
  %v1178 = vpop.permute.xlu0 %1177
  %1179 = vrot.lane.b32.xlu0 %v176, 72
  %v1180 = vpop.permute.xlu0 %1179
  %v1181 = vsel %vm189, %v1178, 0
  %v1183 = vsel %vm189, %v1180, 0
  %1185 = vmatprep.subr.mxu0 0.0
  %1186 = vmatpush1.xpose.msra.mxu0 0.0
  %1187 = vmatprep.subr.mxu0 0.0
  %1188 = vmatpush1.xpose.msra.mxu0 0.0
  %1189 = vmatprep.subr.mxu0 0.0
  %1190 = vmatpush1.xpose.msra.mxu0 0.0
  %1191 = vmatprep.subr.mxu0 0.0
  %1192 = vmatpush1.xpose.msra.mxu0 0.0
  %1193 = vmatprep.subr.mxu0 0.0
  %1194 = vmatpush1.xpose.msra.mxu0 0.0
  %1195 = vmatprep.subr.mxu0 0.0
  %1196 = vmatpush1.xpose.msra.mxu0 0.0
  %1197 = vmatprep.subr.mxu0 0.0
  %1198 = vmatpush1.xpose.msra.mxu0 0.0
  %1199 = vmatprep.subr.mxu0 0.0
  %1200 = vmatpush1.xpose.msra.mxu0 0.0
  %1201 = vmatprep.subr.mxu0 0.0
  %1202 = vmatpush1.xpose.msra.mxu0 0.0
  %1203 = vmatprep.subr.mxu0 0.0
  %1204 = vmatpush1.xpose.msra.mxu0 0.0
  %1205 = vmatprep.subr.mxu0 0.0
  %1206 = vmatpush1.xpose.msra.mxu0 0.0
  %1207 = vmatprep.subr.mxu0 0.0
  %1208 = vmatpush1.xpose.msra.mxu0 0.0
  %1209 = vmatprep.subr.mxu0 0.0
  %1210 = vmatpush1.xpose.msra.mxu0 0.0
  %1211 = vmatprep.subr.mxu0 0.0
  %1212 = vmatpush1.xpose.msra.mxu0 0.0
  %1213 = vmatprep.subr.mxu0 0.0
  %1214 = vmatpush1.xpose.msra.mxu0 0.0
  %1215 = vmatprep.subr.mxu0 0.0
  %1216 = vmatpush1.xpose.msra.mxu0 %v1183
  %1217 = vmatprep.subr.mxu0 0.0
  %1218 = vmatpush2.xpose.msra.mxu0 0.0
  %1219 = vmatprep.subr.mxu0 0.0
  %1220 = vmatpush2.xpose.msra.mxu0 0.0
  %1221 = vmatprep.subr.mxu0 0.0
  %1222 = vmatpush2.xpose.msra.mxu0 0.0
  %1223 = vmatprep.subr.mxu0 0.0
  %1224 = vmatpush2.xpose.msra.mxu0 0.0
  %1225 = vmatprep.subr.mxu0 0.0
  %1226 = vmatpush2.xpose.msra.mxu0 0.0
  %1227 = vmatprep.subr.mxu0 0.0
  %1228 = vmatpush2.xpose.msra.mxu0 0.0
  %1229 = vmatprep.subr.mxu0 0.0
  %1230 = vmatpush2.xpose.msra.mxu0 0.0
  %1231 = vmatprep.subr.mxu0 0.0
  %1232 = vmatpush2.xpose.msra.mxu0 0.0
  %1233 = vmatprep.subr.mxu0 0.0
  %1234 = vmatpush2.xpose.msra.mxu0 0.0
  %1235 = vmatprep.subr.mxu0 0.0
  %1236 = vmatpush2.xpose.msra.mxu0 0.0
  %1237 = vmatprep.subr.mxu0 0.0
  %1238 = vmatpush2.xpose.msra.mxu0 0.0
  %1239 = vmatprep.subr.mxu0 0.0
  %1240 = vmatpush2.xpose.msra.mxu0 0.0
  %1241 = vmatprep.subr.mxu0 0.0
  %1242 = vmatpush2.xpose.msra.mxu0 0.0
  %1243 = vmatprep.subr.mxu0 0.0
  %1244 = vmatpush2.xpose.msra.mxu0 0.0
  %1245 = vmatprep.subr.mxu0 0.0
  %1246 = vmatpush2.xpose.msra.mxu0 0.0
  %1247 = vmatprep.subr.mxu0 0.0
  %1248 = vmatpush2.xpose.msra.mxu0 0.0
  %1249 = vmatprep.mubr.f32.mxu0 0.0
  %1250 = vmatmul.mubr.f32.gmra.mxu0 %v1181
  %v1251 = vpop.f32.mrf.mxu0
  %v1252 = vadd.f32 0.0, %v1251
  %v1253 = vpop.f32.mrf.mxu0
  %1254 = vdwg.mxu0
  %1255 = vrot.lane.b32.xlu0 %v185, 104
  %v1256 = vpop.permute.xlu0 %1255
  %1257 = vrot.lane.b32.xlu0 %v181, 72
  %v1258 = vpop.permute.xlu0 %1257
  %v1259 = vsel %vm189, %v1256, 0
  %v1261 = vsel %vm189, %v1258, 0
  %1263 = vmatprep.subr.mxu0 0.0
  %1264 = vmatpush1.xpose.msra.mxu0 0.0
  %1265 = vmatprep.subr.mxu0 0.0
  %1266 = vmatpush1.xpose.msra.mxu0 0.0
  %1267 = vmatprep.subr.mxu0 0.0
  %1268 = vmatpush1.xpose.msra.mxu0 0.0
  %1269 = vmatprep.subr.mxu0 0.0
  %1270 = vmatpush1.xpose.msra.mxu0 0.0
  %1271 = vmatprep.subr.mxu0 0.0
  %1272 = vmatpush1.xpose.msra.mxu0 0.0
  %1273 = vmatprep.subr.mxu0 0.0
  %1274 = vmatpush1.xpose.msra.mxu0 0.0
  %1275 = vmatprep.subr.mxu0 0.0
  %1276 = vmatpush1.xpose.msra.mxu0 0.0
  %1277 = vmatprep.subr.mxu0 0.0
  %1278 = vmatpush1.xpose.msra.mxu0 0.0
  %1279 = vmatprep.subr.mxu0 0.0
  %1280 = vmatpush1.xpose.msra.mxu0 0.0
  %1281 = vmatprep.subr.mxu0 0.0
  %1282 = vmatpush1.xpose.msra.mxu0 0.0
  %1283 = vmatprep.subr.mxu0 0.0
  %1284 = vmatpush1.xpose.msra.mxu0 0.0
  %1285 = vmatprep.subr.mxu0 0.0
  %1286 = vmatpush1.xpose.msra.mxu0 0.0
  %1287 = vmatprep.subr.mxu0 0.0
  %1288 = vmatpush1.xpose.msra.mxu0 0.0
  %1289 = vmatprep.subr.mxu0 0.0
  %1290 = vmatpush1.xpose.msra.mxu0 0.0
  %1291 = vmatprep.subr.mxu0 0.0
  %1292 = vmatpush1.xpose.msra.mxu0 0.0
  %1293 = vmatprep.subr.mxu0 0.0
  %1294 = vmatpush1.xpose.msra.mxu0 %v1261
  %1295 = vmatprep.subr.mxu0 0.0
  %1296 = vmatpush2.xpose.msra.mxu0 0.0
  %1297 = vmatprep.subr.mxu0 0.0
  %1298 = vmatpush2.xpose.msra.mxu0 0.0
  %1299 = vmatprep.subr.mxu0 0.0
  %1300 = vmatpush2.xpose.msra.mxu0 0.0
  %1301 = vmatprep.subr.mxu0 0.0
  %1302 = vmatpush2.xpose.msra.mxu0 0.0
  %1303 = vmatprep.subr.mxu0 0.0
  %1304 = vmatpush2.xpose.msra.mxu0 0.0
  %1305 = vmatprep.subr.mxu0 0.0
  %1306 = vmatpush2.xpose.msra.mxu0 0.0
  %1307 = vmatprep.subr.mxu0 0.0
  %1308 = vmatpush2.xpose.msra.mxu0 0.0
  %1309 = vmatprep.subr.mxu0 0.0
  %1310 = vmatpush2.xpose.msra.mxu0 0.0
  %1311 = vmatprep.subr.mxu0 0.0
  %1312 = vmatpush2.xpose.msra.mxu0 0.0
  %1313 = vmatprep.subr.mxu0 0.0
  %1314 = vmatpush2.xpose.msra.mxu0 0.0
  %1315 = vmatprep.subr.mxu0 0.0
  %1316 = vmatpush2.xpose.msra.mxu0 0.0
  %1317 = vmatprep.subr.mxu0 0.0
  %1318 = vmatpush2.xpose.msra.mxu0 0.0
  %1319 = vmatprep.subr.mxu0 0.0
  %1320 = vmatpush2.xpose.msra.mxu0 0.0
  %1321 = vmatprep.subr.mxu0 0.0
  %1322 = vmatpush2.xpose.msra.mxu0 0.0
  %1323 = vmatprep.subr.mxu0 0.0
  %1324 = vmatpush2.xpose.msra.mxu0 0.0
  %1325 = vmatprep.subr.mxu0 0.0
  %1326 = vmatpush2.xpose.msra.mxu0 0.0
  %1327 = vmatprep.mubr.f32.mxu0 0.0
  %1328 = vmatmul.mubr.f32.gmra.mxu0 %v1259
  %v1329 = vpop.f32.mrf.mxu0
  %v1330 = vadd.f32 0.0, %v1329
  %v1331 = vpop.f32.mrf.mxu0
  %1332 = vdwg.mxu0
  %v1333 = vsel %vm189, %v1252, -inf
  %1334 = vmax.xlane.f32.xlu0 %v1333
  %v1335 = vpop.xlane.xlu0 %1334
  %v1336 = vsel %vm189, %v1330, -inf
  %1337 = vmax.xlane.f32.xlu0 %v1336
  %v1338 = vpop.xlane.xlu0 %1337
  %v1339 = vsub.f32 %v1252, %v1335
  %v1340 = vsub.f32 %v1330, %v1338
  %v1341 = vmul.f32 %v1339, 1.442695
  %v1342 = vpow.pop %v1341
  %v1343 = vmul.f32 %v1340, 1.442695
  %v1344 = vpow.pop %v1343
  %v1345 = vsel %vm189, %v1342, 0.0
  %1346 = vadd.xlane.f32.xlu0 %v1345
  %v1347 = vpop.xlane.xlu0 %1346
  %v1348 = vsel %vm189, %v1344, 0.0
  %1349 = vadd.xlane.f32.xlu0 %v1348
  %v1350 = vpop.xlane.xlu0 %1349
  %v1351 = vrcp.pop %v1347
  %v1352 = vrcp.pop %v1350
  %v1353 = vmul.f32 %v1342, %v1351
  %v1354 = vmul.f32 %v1344, %v1352
  %1355 = vrot.lane.b32.xlu0 %v176, 40
  %v1356 = vpop.permute.xlu0 %1355
  %v1359 = vsel %vm189, %v1353, 0
  %1361 = vmatprep.subr.mxu0 0.0
  %1362 = vmatpush1.msra.mxu0 0.0
  %1363 = vmatprep.subr.mxu0 0.0
  %1364 = vmatpush1.msra.mxu0 0.0
  %1365 = vmatprep.subr.mxu0 0.0
  %1366 = vmatpush1.msra.mxu0 0.0
  %1367 = vmatprep.subr.mxu0 0.0
  %1368 = vmatpush1.msra.mxu0 0.0
  %1369 = vmatprep.subr.mxu0 0.0
  %1370 = vmatpush1.msra.mxu0 0.0
  %1371 = vmatprep.subr.mxu0 0.0
  %1372 = vmatpush1.msra.mxu0 0.0
  %1373 = vmatprep.subr.mxu0 0.0
  %1374 = vmatpush1.msra.mxu0 0.0
  %1375 = vmatprep.subr.mxu0 0.0
  %1376 = vmatpush1.msra.mxu0 0.0
  %1377 = vmatprep.subr.mxu0 0.0
  %1378 = vmatpush1.msra.mxu0 0.0
  %1379 = vmatprep.subr.mxu0 0.0
  %1380 = vmatpush1.msra.mxu0 0.0
  %1381 = vmatprep.subr.mxu0 0.0
  %1382 = vmatpush1.msra.mxu0 0.0
  %1383 = vmatprep.subr.mxu0 0.0
  %1384 = vmatpush1.msra.mxu0 0.0
  %1385 = vmatprep.subr.mxu0 0.0
  %1386 = vmatpush1.msra.mxu0 0.0
  %1387 = vmatprep.subr.mxu0 0.0
  %1388 = vmatpush1.msra.mxu0 0.0
  %1389 = vmatprep.subr.mxu0 0.0
  %1390 = vmatpush1.msra.mxu0 0.0
  %1391 = vmatprep.subr.mxu0 0.0
  %1392 = vmatpush1.msra.mxu0 %v1356
  %1393 = vmatprep.subr.mxu0 0.0
  %1394 = vmatpush2.msra.mxu0 0.0
  %1395 = vmatprep.subr.mxu0 0.0
  %1396 = vmatpush2.msra.mxu0 0.0
  %1397 = vmatprep.subr.mxu0 0.0
  %1398 = vmatpush2.msra.mxu0 0.0
  %1399 = vmatprep.subr.mxu0 0.0
  %1400 = vmatpush2.msra.mxu0 0.0
  %1401 = vmatprep.subr.mxu0 0.0
  %1402 = vmatpush2.msra.mxu0 0.0
  %1403 = vmatprep.subr.mxu0 0.0
  %1404 = vmatpush2.msra.mxu0 0.0
  %1405 = vmatprep.subr.mxu0 0.0
  %1406 = vmatpush2.msra.mxu0 0.0
  %1407 = vmatprep.subr.mxu0 0.0
  %1408 = vmatpush2.msra.mxu0 0.0
  %1409 = vmatprep.subr.mxu0 0.0
  %1410 = vmatpush2.msra.mxu0 0.0
  %1411 = vmatprep.subr.mxu0 0.0
  %1412 = vmatpush2.msra.mxu0 0.0
  %1413 = vmatprep.subr.mxu0 0.0
  %1414 = vmatpush2.msra.mxu0 0.0
  %1415 = vmatprep.subr.mxu0 0.0
  %1416 = vmatpush2.msra.mxu0 0.0
  %1417 = vmatprep.subr.mxu0 0.0
  %1418 = vmatpush2.msra.mxu0 0.0
  %1419 = vmatprep.subr.mxu0 0.0
  %1420 = vmatpush2.msra.mxu0 0.0
  %1421 = vmatprep.subr.mxu0 0.0
  %1422 = vmatpush2.msra.mxu0 0.0
  %1423 = vmatprep.subr.mxu0 0.0
  %1424 = vmatpush2.msra.mxu0 0.0
  %1425 = vmatprep.mubr.f32.mxu0 0.0
  %1426 = vmatmul.mubr.f32.gmra.mxu0 %v1359
  %v1427 = vpop.f32.mrf.mxu0
  %v1428 = vadd.f32 0.0, %v1427
  %v1429 = vpop.f32.mrf.mxu0
  %1430 = vdwg.mxu0
  %1431 = vrot.lane.b32.xlu0 %v181, 40
  %v1432 = vpop.permute.xlu0 %1431
  %v1435 = vsel %vm189, %v1354, 0
  %1437 = vmatprep.subr.mxu0 0.0
  %1438 = vmatpush1.msra.mxu0 0.0
  %1439 = vmatprep.subr.mxu0 0.0
  %1440 = vmatpush1.msra.mxu0 0.0
  %1441 = vmatprep.subr.mxu0 0.0
  %1442 = vmatpush1.msra.mxu0 0.0
  %1443 = vmatprep.subr.mxu0 0.0
  %1444 = vmatpush1.msra.mxu0 0.0
  %1445 = vmatprep.subr.mxu0 0.0
  %1446 = vmatpush1.msra.mxu0 0.0
  %1447 = vmatprep.subr.mxu0 0.0
  %1448 = vmatpush1.msra.mxu0 0.0
  %1449 = vmatprep.subr.mxu0 0.0
  %1450 = vmatpush1.msra.mxu0 0.0
  %1451 = vmatprep.subr.mxu0 0.0
  %1452 = vmatpush1.msra.mxu0 0.0
  %1453 = vmatprep.subr.mxu0 0.0
  %1454 = vmatpush1.msra.mxu0 0.0
  %1455 = vmatprep.subr.mxu0 0.0
  %1456 = vmatpush1.msra.mxu0 0.0
  %1457 = vmatprep.subr.mxu0 0.0
  %1458 = vmatpush1.msra.mxu0 0.0
  %1459 = vmatprep.subr.mxu0 0.0
  %1460 = vmatpush1.msra.mxu0 0.0
  %1461 = vmatprep.subr.mxu0 0.0
  %1462 = vmatpush1.msra.mxu0 0.0
  %1463 = vmatprep.subr.mxu0 0.0
  %1464 = vmatpush1.msra.mxu0 0.0
  %1465 = vmatprep.subr.mxu0 0.0
  %1466 = vmatpush1.msra.mxu0 0.0
  %1467 = vmatprep.subr.mxu0 0.0
  %1468 = vmatpush1.msra.mxu0 %v1432
  %1469 = vmatprep.subr.mxu0 0.0
  %1470 = vmatpush2.msra.mxu0 0.0
  %1471 = vmatprep.subr.mxu0 0.0
  %1472 = vmatpush2.msra.mxu0 0.0
  %1473 = vmatprep.subr.mxu0 0.0
  %1474 = vmatpush2.msra.mxu0 0.0
  %1475 = vmatprep.subr.mxu0 0.0
  %1476 = vmatpush2.msra.mxu0 0.0
  %1477 = vmatprep.subr.mxu0 0.0
  %1478 = vmatpush2.msra.mxu0 0.0
  %1479 = vmatprep.subr.mxu0 0.0
  %1480 = vmatpush2.msra.mxu0 0.0
  %1481 = vmatprep.subr.mxu0 0.0
  %1482 = vmatpush2.msra.mxu0 0.0
  %1483 = vmatprep.subr.mxu0 0.0
  %1484 = vmatpush2.msra.mxu0 0.0
  %1485 = vmatprep.subr.mxu0 0.0
  %1486 = vmatpush2.msra.mxu0 0.0
  %1487 = vmatprep.subr.mxu0 0.0
  %1488 = vmatpush2.msra.mxu0 0.0
  %1489 = vmatprep.subr.mxu0 0.0
  %1490 = vmatpush2.msra.mxu0 0.0
  %1491 = vmatprep.subr.mxu0 0.0
  %1492 = vmatpush2.msra.mxu0 0.0
  %1493 = vmatprep.subr.mxu0 0.0
  %1494 = vmatpush2.msra.mxu0 0.0
  %1495 = vmatprep.subr.mxu0 0.0
  %1496 = vmatpush2.msra.mxu0 0.0
  %1497 = vmatprep.subr.mxu0 0.0
  %1498 = vmatpush2.msra.mxu0 0.0
  %1499 = vmatprep.subr.mxu0 0.0
  %1500 = vmatpush2.msra.mxu0 0.0
  %1501 = vmatprep.mubr.f32.mxu0 0.0
  %1502 = vmatmul.mubr.f32.gmra.mxu0 %v1435
  %v1503 = vpop.f32.mrf.mxu0
  %v1504 = vadd.f32 0.0, %v1503
  %v1505 = vpop.f32.mrf.mxu0
  %1506 = vdwg.mxu0
  %1509 = vrot.lane.b32.xlu0 %v768, 8
  %v1510 = vpop.permute.xlu0 %1509
  %1511 = vrot.lane.b32.xlu0 %v844, 8
  %v1512 = vpop.permute.xlu0 %1511
  %1517 = vrot.lane.b32.xlu0 %v1098, 16
  %v1518 = vpop.permute.xlu0 %1517
  %1519 = vrot.lane.b32.xlu0 %v1174, 16
  %v1520 = vpop.permute.xlu0 %1519
  %1525 = vrot.lane.b32.xlu0 %v1428, 24
  %v1526 = vpop.permute.xlu0 %1525
  %1527 = vrot.lane.b32.xlu0 %v1504, 24
  %v1528 = vpop.permute.xlu0 %1527
  %v1531 = vsel %vm189, %v438, %v1510
  %v1532 = vsel %vm189, %v514, %v1512
  %vm1533 = vcmask 130048
  %v1534 = vsel %vm1533, %v1531, %v1518
  %v1535 = vsel %vm1533, %v1532, %v1520
  %vm1536 = vcmask 195584
  %v1537 = vsel %vm1536, %v1534, %v1526
  %v1538 = vsel %vm1536, %v1535, %v1528
  %v1539 = vld [vmem:[%s5] sm:$0xff]
  %v1540 = vld [vmem:[%s5 + $0x8] sm:$0xff]
  %v1541 = vld [vmem:[%s5 + $0x10] sm:$0xff]
  %v1542 = vld [vmem:[%s5 + $0x18] sm:$0xff]
  %v1543 = vld [vmem:[%s6] sm:$0x1]
  %v1545 = vlaneseq
  %v1546 = vshrl.u32 %v1545, 7
  %v1547 = vsub.s32 0, %v1546
  %v1548 = vrot.slane %v1543, %v1547
  %v1551 = vsel %vm48, %v1537, 0
  %v1554 = vsel %vm48, %v1538, 0
  %1556 = vmatprep.subr.mxu0 0.0
  %1557 = vmatpush1.msra.mxu0 0.0
  %1558 = vmatprep.subr.mxu0 0.0
  %1559 = vmatpush1.msra.mxu0 0.0
  %1560 = vmatprep.subr.mxu0 0.0
  %1561 = vmatpush1.msra.mxu0 0.0
  %1562 = vmatprep.subr.mxu0 0.0
  %1563 = vmatpush1.msra.mxu0 0.0
  %1564 = vmatprep.subr.mxu0 0.0
  %1565 = vmatpush1.msra.mxu0 0.0
  %1566 = vmatprep.subr.mxu0 0.0
  %1567 = vmatpush1.msra.mxu0 0.0
  %1568 = vmatprep.subr.mxu0 0.0
  %1569 = vmatpush1.msra.mxu0 0.0
  %1570 = vmatprep.subr.mxu0 0.0
  %1571 = vmatpush1.msra.mxu0 0.0
  %1572 = vmatprep.subr.mxu0 0.0
  %1573 = vmatpush1.msra.mxu0 0.0
  %1574 = vmatprep.subr.mxu0 0.0
  %1575 = vmatpush1.msra.mxu0 0.0
  %1576 = vmatprep.subr.mxu0 0.0
  %1577 = vmatpush1.msra.mxu0 0.0
  %1578 = vmatprep.subr.mxu0 0.0
  %1579 = vmatpush1.msra.mxu0 0.0
  %1580 = vmatprep.subr.mxu0 0.0
  %1581 = vmatpush1.msra.mxu0 %v1542
  %1582 = vmatprep.subr.mxu0 0.0
  %1583 = vmatpush1.msra.mxu0 %v1541
  %1584 = vmatprep.subr.mxu0 0.0
  %1585 = vmatpush1.msra.mxu0 %v1540
  %1586 = vmatprep.subr.mxu0 0.0
  %1587 = vmatpush1.msra.mxu0 %v1539
  %1588 = vmatprep.subr.mxu0 0.0
  %1589 = vmatpush2.msra.mxu0 0.0
  %1590 = vmatprep.subr.mxu0 0.0
  %1591 = vmatpush2.msra.mxu0 0.0
  %1592 = vmatprep.subr.mxu0 0.0
  %1593 = vmatpush2.msra.mxu0 0.0
  %1594 = vmatprep.subr.mxu0 0.0
  %1595 = vmatpush2.msra.mxu0 0.0
  %1596 = vmatprep.subr.mxu0 0.0
  %1597 = vmatpush2.msra.mxu0 0.0
  %1598 = vmatprep.subr.mxu0 0.0
  %1599 = vmatpush2.msra.mxu0 0.0
  %1600 = vmatprep.subr.mxu0 0.0
  %1601 = vmatpush2.msra.mxu0 0.0
  %1602 = vmatprep.subr.mxu0 0.0
  %1603 = vmatpush2.msra.mxu0 0.0
  %1604 = vmatprep.subr.mxu0 0.0
  %1605 = vmatpush2.msra.mxu0 0.0
  %1606 = vmatprep.subr.mxu0 0.0
  %1607 = vmatpush2.msra.mxu0 0.0
  %1608 = vmatprep.subr.mxu0 0.0
  %1609 = vmatpush2.msra.mxu0 0.0
  %1610 = vmatprep.subr.mxu0 0.0
  %1611 = vmatpush2.msra.mxu0 0.0
  %1612 = vmatprep.subr.mxu0 0.0
  %1613 = vmatpush2.msra.mxu0 0.0
  %1614 = vmatprep.subr.mxu0 0.0
  %1615 = vmatpush2.msra.mxu0 0.0
  %1616 = vmatprep.subr.mxu0 0.0
  %1617 = vmatpush2.msra.mxu0 0.0
  %1618 = vmatprep.subr.mxu0 0.0
  %1619 = vmatpush2.msra.mxu0 0.0
  %1620 = vmatprep.mubr.f32.mxu0 0.0
  %1621 = vmatmul.mubr.f32.gmra.mxu0 %v1551
  %v1622 = vpop.f32.mrf.mxu0
  %v1623 = vadd.f32 %v1548, %v1622
  %v1624 = vpop.f32.mrf.mxu0
  %1625 = vmatprep.mubr.f32.mxu0 0.0
  %1626 = vmatmul.mubr.f32.gmra.mxu0 %v1554
  %v1627 = vpop.f32.mrf.mxu0
  %v1628 = vadd.f32 %v1548, %v1627
  %v1629 = vpop.f32.mrf.mxu0
  %1630 = vdwg.mxu0
  %v1631 = vadd.f32 %v44, %v1623
  %v1632 = vadd.f32 %v45, %v1628
  %v1633 = vld [vmem:[%s7] sm:$0x1]
  %v1634 = vld [vmem:[%s8] sm:$0x1]
  %v1635 = vsel %vm48, %v1631, 0.0
  %1636 = vadd.xlane.f32.xlu0 %v1635
  %v1637 = vpop.xlane.xlu0 %1636
  %v1638 = vsel %vm48, %v1632, 0.0
  %1639 = vadd.xlane.f32.xlu0 %v1638
  %v1640 = vpop.xlane.xlu0 %1639
  %v1641 = vmul.f32 %v1637, %v55
  %v1642 = vmul.f32 %v1640, %v55
  %v1643 = vsub.f32 %v1631, %v1641
  %v1644 = vsub.f32 %v1632, %v1642
  %v1645 = vmul.f32 %v1643, %v1643
  %v1646 = vmul.f32 %v1644, %v1644
  %v1647 = vsel %vm48, %v1645, 0.0
  %1648 = vadd.xlane.f32.xlu0 %v1647
  %v1649 = vpop.xlane.xlu0 %1648
  %v1650 = vsel %vm48, %v1646, 0.0
  %1651 = vadd.xlane.f32.xlu0 %v1650
  %v1652 = vpop.xlane.xlu0 %1651
  %v1653 = vmul.f32 %v1649, %v55
  %v1654 = vmul.f32 %v1652, %v55
  %v1655 = vadd.f32 %v1653, 1e-05
  %v1656 = vadd.f32 %v1654, 1e-05
  %v1657 = vrsqrt.pop %v1655
  %v1658 = vrsqrt.pop %v1656
  %v1659 = vmul.f32 %v1643, %v1657
  %v1660 = vmul.f32 %v1644, %v1658
  %v1662 = vlaneseq
  %v1663 = vshrl.u32 %v1662, 7
  %v1664 = vsub.s32 0, %v1663
  %v1665 = vrot.slane %v1633, %v1664
  %v1667 = vmul.f32 %v1659, %v1665
  %v1668 = vmul.f32 %v1660, %v1665
  %v1670 = vlaneseq
  %v1671 = vshrl.u32 %v1670, 7
  %v1672 = vsub.s32 0, %v1671
  %v1673 = vrot.slane %v1634, %v1672
  %v1675 = vadd.f32 %v1667, %v1673
  %v1676 = vadd.f32 %v1668, %v1673
  %v1677 = vld [vmem:[%s9] sm:$0xff]
  %v1678 = vld [vmem:[%s9 + $0x8] sm:$0xff]
  %v1679 = vld [vmem:[%s9 + $0x10] sm:$0xff]
  %v1680 = vld [vmem:[%s9 + $0x18] sm:$0xff]
  %v1681 = vld [vmem:[%s10] sm:$0x1]
  %v1683 = vlaneseq
  %v1684 = vshrl.u32 %v1683, 7
  %v1685 = vsub.s32 0, %v1684
  %v1686 = vrot.slane %v1681, %v1685
  %v1689 = vsel %vm48, %v1675, 0
  %v1692 = vsel %vm48, %v1676, 0
  %1694 = vmatprep.subr.mxu0 0.0
  %1695 = vmatpush1.msra.mxu0 0.0
  %1696 = vmatprep.subr.mxu0 0.0
  %1697 = vmatpush1.msra.mxu0 0.0
  %1698 = vmatprep.subr.mxu0 0.0
  %1699 = vmatpush1.msra.mxu0 0.0
  %1700 = vmatprep.subr.mxu0 0.0
  %1701 = vmatpush1.msra.mxu0 0.0
  %1702 = vmatprep.subr.mxu0 0.0
  %1703 = vmatpush1.msra.mxu0 0.0
  %1704 = vmatprep.subr.mxu0 0.0
  %1705 = vmatpush1.msra.mxu0 0.0
  %1706 = vmatprep.subr.mxu0 0.0
  %1707 = vmatpush1.msra.mxu0 0.0
  %1708 = vmatprep.subr.mxu0 0.0
  %1709 = vmatpush1.msra.mxu0 0.0
  %1710 = vmatprep.subr.mxu0 0.0
  %1711 = vmatpush1.msra.mxu0 0.0
  %1712 = vmatprep.subr.mxu0 0.0
  %1713 = vmatpush1.msra.mxu0 0.0
  %1714 = vmatprep.subr.mxu0 0.0
  %1715 = vmatpush1.msra.mxu0 0.0
  %1716 = vmatprep.subr.mxu0 0.0
  %1717 = vmatpush1.msra.mxu0 0.0
  %1718 = vmatprep.subr.mxu0 0.0
  %1719 = vmatpush1.msra.mxu0 %v1680
  %1720 = vmatprep.subr.mxu0 0.0
  %1721 = vmatpush1.msra.mxu0 %v1679
  %1722 = vmatprep.subr.mxu0 0.0
  %1723 = vmatpush1.msra.mxu0 %v1678
  %1724 = vmatprep.subr.mxu0 0.0
  %1725 = vmatpush1.msra.mxu0 %v1677
  %1726 = vmatprep.subr.mxu0 0.0
  %1727 = vmatpush2.msra.mxu0 0.0
  %1728 = vmatprep.subr.mxu0 0.0
  %1729 = vmatpush2.msra.mxu0 0.0
  %1730 = vmatprep.subr.mxu0 0.0
  %1731 = vmatpush2.msra.mxu0 0.0
  %1732 = vmatprep.subr.mxu0 0.0
  %1733 = vmatpush2.msra.mxu0 0.0
  %1734 = vmatprep.subr.mxu0 0.0
  %1735 = vmatpush2.msra.mxu0 0.0
  %1736 = vmatprep.subr.mxu0 0.0
  %1737 = vmatpush2.msra.mxu0 0.0
  %1738 = vmatprep.subr.mxu0 0.0
  %1739 = vmatpush2.msra.mxu0 0.0
  %1740 = vmatprep.subr.mxu0 0.0
  %1741 = vmatpush2.msra.mxu0 0.0
  %1742 = vmatprep.subr.mxu0 0.0
  %1743 = vmatpush2.msra.mxu0 0.0
  %1744 = vmatprep.subr.mxu0 0.0
  %1745 = vmatpush2.msra.mxu0 0.0
  %1746 = vmatprep.subr.mxu0 0.0
  %1747 = vmatpush2.msra.mxu0 0.0
  %1748 = vmatprep.subr.mxu0 0.0
  %1749 = vmatpush2.msra.mxu0 0.0
  %1750 = vmatprep.subr.mxu0 0.0
  %1751 = vmatpush2.msra.mxu0 0.0
  %1752 = vmatprep.subr.mxu0 0.0
  %1753 = vmatpush2.msra.mxu0 0.0
  %1754 = vmatprep.subr.mxu0 0.0
  %1755 = vmatpush2.msra.mxu0 0.0
  %1756 = vmatprep.subr.mxu0 0.0
  %1757 = vmatpush2.msra.mxu0 0.0
  %1758 = vmatprep.mubr.f32.mxu0 0.0
  %1759 = vmatmul.mubr.f32.gmra.mxu0 %v1689
  %v1760 = vpop.f32.mrf.mxu0
  %v1761 = vadd.f32 %v1686, %v1760
  %v1762 = vpop.f32.mrf.mxu0
  %1763 = vmatprep.mubr.f32.mxu0 0.0
  %1764 = vmatmul.mubr.f32.gmra.mxu0 %v1692
  %v1765 = vpop.f32.mrf.mxu0
  %v1766 = vadd.f32 %v1686, %v1765
  %v1767 = vpop.f32.mrf.mxu0
  %1768 = vdwg.mxu0
  %v1769 = vmul.f32 %v1761, 0.5
  %v1770 = vmul.f32 %v1766, 0.5
  %v1771 = vmul.f32 %v1761, 0.70710677
  %v1772 = vmul.f32 %v1766, 0.70710677
  %vm1773 = vcmp.ge.f32.partialorder %v1771, 0.0
  %vm1774 = vcmp.ge.f32.partialorder %v1772, 0.0
  %v1775 = vsel %vm1773, 1.0, -1.0
  %v1776 = vsel %vm1774, 1.0, -1.0
  %v1777 = vand.u32 2147483647, %v1771
  %v1778 = vand.u32 2147483647, %v1772
  %v1779 = vmul.f32 %v1777, 0.3275911
  %v1780 = vmul.f32 %v1778, 0.3275911
  %v1781 = vadd.f32 %v1779, 1.0
  %v1782 = vadd.f32 %v1780, 1.0
  %v1783 = vrcp.pop %v1781
  %v1784 = vmul.f32 1.0, %v1783
  %v1785 = vrcp.pop %v1782
  %v1786 = vmul.f32 1.0, %v1785
  %v1787 = vmul.f32 %v1784, 1.0614054
  %v1788 = vmul.f32 %v1786, 1.0614054
  %v1789 = vadd.f32 %v1787, -1.4531521
  %v1790 = vadd.f32 %v1788, -1.4531521
  %v1791 = vmul.f32 %v1789, %v1784
  %v1792 = vmul.f32 %v1790, %v1786
  %v1793 = vadd.f32 %v1791, 1.4214138
  %v1794 = vadd.f32 %v1792, 1.4214138
  %v1795 = vmul.f32 %v1793, %v1784
  %v1796 = vmul.f32 %v1794, %v1786
  %v1797 = vadd.f32 %v1795, -0.28449672
  %v1798 = vadd.f32 %v1796, -0.28449672
  %v1799 = vmul.f32 %v1797, %v1784
  %v1800 = vmul.f32 %v1798, %v1786
  %v1801 = vadd.f32 %v1799, 0.2548296
  %v1802 = vadd.f32 %v1800, 0.2548296
  %v1803 = vmul.f32 %v1801, %v1784
  %v1804 = vmul.f32 %v1802, %v1786
  %v1805 = vsub.f32 0.0, %v1777
  %v1806 = vsub.f32 0.0, %v1778
  %v1807 = vmul.f32 %v1805, %v1777
  %v1808 = vmul.f32 %v1806, %v1778
  %v1809 = vmul.f32 %v1807, 1.442695
  %v1810 = vpow.pop %v1809
  %v1811 = vmul.f32 %v1808, 1.442695
  %v1812 = vpow.pop %v1811
  %v1813 = vmul.f32 %v1803, %v1810
  %v1814 = vmul.f32 %v1804, %v1812
  %v1815 = vsub.f32 1.0, %v1813
  %v1816 = vsub.f32 1.0, %v1814
  %v1817 = vmul.f32 %v1775, %v1815
  %v1818 = vmul.f32 %v1776, %v1816
  %v1819 = vadd.f32 %v1817, 1.0
  %v1820 = vadd.f32 %v1818, 1.0
  %v1821 = vmul.f32 %v1769, %v1819
  %v1822 = vmul.f32 %v1770, %v1820
  %v1823 = vld [vmem:[%s11] sm:$0xff]
  %v1824 = vld [vmem:[%s11 + $0x8] sm:$0xff]
  %v1825 = vld [vmem:[%s11 + $0x10] sm:$0xff]
  %v1826 = vld [vmem:[%s11 + $0x18] sm:$0xff]
  %v1827 = vld [vmem:[%s11 + $0x20] sm:$0xff]
  %v1828 = vld [vmem:[%s11 + $0x28] sm:$0xff]
  %v1829 = vld [vmem:[%s11 + $0x30] sm:$0xff]
  %v1830 = vld [vmem:[%s11 + $0x38] sm:$0xff]
  %v1831 = vld [vmem:[%s11 + $0x40] sm:$0xff]
  %v1832 = vld [vmem:[%s11 + $0x48] sm:$0xff]
  %v1833 = vld [vmem:[%s11 + $0x50] sm:$0xff]
  %v1834 = vld [vmem:[%s11 + $0x58] sm:$0xff]
  %v1835 = vld [vmem:[%s11 + $0x60] sm:$0xff]
  %v1836 = vld [vmem:[%s11 + $0x68] sm:$0xff]
  %v1837 = vld [vmem:[%s11 + $0x70] sm:$0xff]
  %v1838 = vld [vmem:[%s11 + $0x78] sm:$0xff]
  %v1839 = vld [vmem:[%s12] sm:$0x1]
  %v1841 = vlaneseq
  %v1842 = vshrl.u32 %v1841, 7
  %v1843 = vsub.s32 0, %v1842
  %v1844 = vrot.slane %v1839, %v1843
  %1846 = vmatprep.subr.mxu0 0.0
  %1847 = vmatpush1.msra.mxu0 %v1838
  %1848 = vmatprep.subr.mxu0 0.0
  %1849 = vmatpush1.msra.mxu0 %v1837
  %1850 = vmatprep.subr.mxu0 0.0
  %1851 = vmatpush1.msra.mxu0 %v1836
  %1852 = vmatprep.subr.mxu0 0.0
  %1853 = vmatpush1.msra.mxu0 %v1835
  %1854 = vmatprep.subr.mxu0 0.0
  %1855 = vmatpush1.msra.mxu0 %v1834
  %1856 = vmatprep.subr.mxu0 0.0
  %1857 = vmatpush1.msra.mxu0 %v1833
  %1858 = vmatprep.subr.mxu0 0.0
  %1859 = vmatpush1.msra.mxu0 %v1832
  %1860 = vmatprep.subr.mxu0 0.0
  %1861 = vmatpush1.msra.mxu0 %v1831
  %1862 = vmatprep.subr.mxu0 0.0
  %1863 = vmatpush1.msra.mxu0 %v1830
  %1864 = vmatprep.subr.mxu0 0.0
  %1865 = vmatpush1.msra.mxu0 %v1829
  %1866 = vmatprep.subr.mxu0 0.0
  %1867 = vmatpush1.msra.mxu0 %v1828
  %1868 = vmatprep.subr.mxu0 0.0
  %1869 = vmatpush1.msra.mxu0 %v1827
  %1870 = vmatprep.subr.mxu0 0.0
  %1871 = vmatpush1.msra.mxu0 %v1826
  %1872 = vmatprep.subr.mxu0 0.0
  %1873 = vmatpush1.msra.mxu0 %v1825
  %1874 = vmatprep.subr.mxu0 0.0
  %1875 = vmatpush1.msra.mxu0 %v1824
  %1876 = vmatprep.subr.mxu0 0.0
  %1877 = vmatpush1.msra.mxu0 %v1823
  %1878 = vmatprep.subr.mxu0 0.0
  %1879 = vmatpush2.msra.mxu0 0.0
  %1880 = vmatprep.subr.mxu0 0.0
  %1881 = vmatpush2.msra.mxu0 0.0
  %1882 = vmatprep.subr.mxu0 0.0
  %1883 = vmatpush2.msra.mxu0 0.0
  %1884 = vmatprep.subr.mxu0 0.0
  %1885 = vmatpush2.msra.mxu0 0.0
  %1886 = vmatprep.subr.mxu0 0.0
  %1887 = vmatpush2.msra.mxu0 0.0
  %1888 = vmatprep.subr.mxu0 0.0
  %1889 = vmatpush2.msra.mxu0 0.0
  %1890 = vmatprep.subr.mxu0 0.0
  %1891 = vmatpush2.msra.mxu0 0.0
  %1892 = vmatprep.subr.mxu0 0.0
  %1893 = vmatpush2.msra.mxu0 0.0
  %1894 = vmatprep.subr.mxu0 0.0
  %1895 = vmatpush2.msra.mxu0 0.0
  %1896 = vmatprep.subr.mxu0 0.0
  %1897 = vmatpush2.msra.mxu0 0.0
  %1898 = vmatprep.subr.mxu0 0.0
  %1899 = vmatpush2.msra.mxu0 0.0
  %1900 = vmatprep.subr.mxu0 0.0
  %1901 = vmatpush2.msra.mxu0 0.0
  %1902 = vmatprep.subr.mxu0 0.0
  %1903 = vmatpush2.msra.mxu0 0.0
  %1904 = vmatprep.subr.mxu0 0.0
  %1905 = vmatpush2.msra.mxu0 0.0
  %1906 = vmatprep.subr.mxu0 0.0
  %1907 = vmatpush2.msra.mxu0 0.0
  %1908 = vmatprep.subr.mxu0 0.0
  %1909 = vmatpush2.msra.mxu0 0.0
  %1910 = vmatprep.mubr.f32.mxu0 0.0
  %1911 = vmatmul.mubr.f32.gmra.mxu0 %v1821
  %v1912 = vpop.f32.mrf.mxu0
  %v1913 = vadd.f32 %v1844, %v1912
  %v1914 = vpop.f32.mrf.mxu0
  %1915 = vmatprep.mubr.f32.mxu0 0.0
  %1916 = vmatmul.mubr.f32.gmra.mxu0 %v1822
  %v1917 = vpop.f32.mrf.mxu0
  %v1918 = vadd.f32 %v1844, %v1917
  %v1919 = vpop.f32.mrf.mxu0
  %1920 = vdwg.mxu0
  %v1921 = vadd.f32 %v1631, %v1913
  %v1922 = vadd.f32 %v1632, %v1918
  %1923 = vst.msk [vmem:[%s13] sm:$0xff] %vm48, %v1921
  %1924 = vst.msk [vmem:[%s13 + $0x8] sm:$0xff] %vm48, %v1922
  // Predicated region
  $region54: #{residual_attention_block.1} parent=0 // pred_check
    _
  $region55: #{residual_attention_block.1} parent=0 // pred_check_branch
    %1926 = sbr.rel (0) target = $region57
  $region56: #{residual_attention_block.1} parent=0 // pred_region
    _
  $region57: #{residual_attention_block.1} parent=0 // pred_fallthru
    _
  // Predicated region
  $region58: #{residual_attention_block.1} parent=0 // pred_check
    _
  $region59: #{residual_attention_block.1} parent=0 // pred_check_branch
    %1928 = sbr.rel (0) target = $region61
  $region60: #{residual_attention_block.1} parent=0 // pred_region
    _
  $region61: #{residual_attention_block.1} parent=0 // pred_fallthru
    _

</llo_original>
